<compile_context>
chip_gen: v6e
topology: v6e:2x2x1
jax: 0.10.0
libtpu: 0.0.40
codegen_flags: <defaults>
</compile_context>

<pallas_src>
import functools

import jax
import jax.numpy as jnp
from jax.experimental import pallas as pl
from jax.experimental.pallas import tpu as pltpu

EPS = 1e-5
_LANE = 128
_MIB = 1 << 20

# Conservative VMEM budgets (v7x: 64 MiB physical / 32 MiB scoped default;
# v5e: 16 MiB scoped default).
_FUSED_VMEM_BUDGET = 20 * _MIB     # resident activation + operand blocks
_PASS1_VMEM_BUDGET = 14 * _MIB     # per-step blocks for the two-pass matmul


def _round_up(x, m):
    return ((x + m - 1) // m) * m


# ---------------------------------------------------------------------------
# pipeline_mode=pl.Buffered(1) probe: single-buffer constant-index blocks
# when supported by the running JAX, otherwise fall back to default buffering.
# ---------------------------------------------------------------------------
def _probe_buffered_support():
    if not hasattr(pl, "Buffered"):
        return False
    try:
        def _probe_kernel(x_ref, o_ref):
            o_ref[...] = x_ref[...] + 1.0

        fn = pl.pallas_call(
            _probe_kernel,
            out_shape=jax.ShapeDtypeStruct((8, _LANE), jnp.float32),
            grid=(2,),
            in_specs=[pl.BlockSpec((8, _LANE), lambda i: (0, 0),
                                   pipeline_mode=pl.Buffered(1))],
            out_specs=pl.BlockSpec((8, _LANE), lambda i: (0, 0)),
        )
        jax.block_until_ready(fn(jnp.zeros((8, _LANE), jnp.float32)))
        return True
    except Exception:   # version-dependent: fall back to default buffering
        return False


_BUFFERED_OK = _probe_buffered_support()


def _resident_spec(block_shape, index_map):
    """BlockSpec for a block whose index never changes (single-buffered)."""
    if _BUFFERED_OK:
        return pl.BlockSpec(block_shape, index_map, pipeline_mode=pl.Buffered(1))
    return pl.BlockSpec(block_shape, index_map)


# ---------------------------------------------------------------------------
# Fused path: conv (matmul) + BN statistics + BN + ReLU in ONE pallas_call.
# The padded activation (M_pad, Cp) is a resident VMEM output block; grid
# steps stream patch tiles through the MXU and accumulate per-channel
# sum / sum-of-squares; the last step folds BN into scale/shift and applies
# it (plus ReLU) in place.  No conv_full HBM round trip.
# ---------------------------------------------------------------------------
def _fused_kernel(p_ref, w_ref, g_ref, be_ref, o_ref, sum_sc, ssq_sc,
                  *, tm, grid_m, m_valid):
    i = pl.program_id(0)

    @pl.when(i == 0)
    def _():
        sum_sc[...] = jnp.zeros_like(sum_sc)
        ssq_sc[...] = jnp.zeros_like(ssq_sc)

    conv = jnp.dot(p_ref[...], w_ref[...], preferred_element_type=jnp.float32)
    conv_st = conv.astype(o_ref.dtype)          # stats taken from stored values
    r0 = pl.multiple_of(i * tm, tm)
    o_ref[pl.ds(r0, tm), :] = conv_st

    # No conv bias and no row masking: the bias cancels exactly through
    # training-mode BN, and zero-padded rows then contribute exactly 0.
    c = conv_st.astype(jnp.float32)
    sum_sc[...] += jnp.sum(c, axis=0, keepdims=True)
    ssq_sc[...] += jnp.sum(c * c, axis=0, keepdims=True)

    @pl.when(i == grid_m - 1)
    def _():
        inv_m = 1.0 / m_valid
        mean = sum_sc[...] * inv_m
        var = jnp.maximum(ssq_sc[...] * inv_m - mean * mean, 0.0)  # biased var
        scale = g_ref[...] * jax.lax.rsqrt(var + EPS)
        shift = be_ref[...] - mean * scale

        def _apply(t, carry):
            rt = pl.multiple_of(t * tm, tm)
            v = o_ref[pl.ds(rt, tm), :].astype(jnp.float32)
            y = jnp.maximum(v * scale + shift, 0.0)
            o_ref[pl.ds(rt, tm), :] = y.astype(o_ref.dtype)
            return carry

        jax.lax.fori_loop(0, grid_m, _apply, 0)


# ---------------------------------------------------------------------------
# Two-pass path, pass 1: K-tiled matmul with an f32 accumulator scratch; at
# the last K step the conv tile is stored (bf16 on the fast path) and
# per-tile partial sum / sum-of-squares are emitted as one (8, Cp) block per
# M tile, so the M grid axis stays "parallel" (v7x megacore) and the glue
# gets a tree reduction for the statistics.
# ---------------------------------------------------------------------------
def _matmul_stats_kernel(p_ref, w_ref, conv_ref, psum_ref, pssq_ref, acc_ref,
                         *, grid_k):
    k = pl.program_id(1)

    @pl.when(k == 0)
    def _():
        acc_ref[...] = jnp.zeros_like(acc_ref)

    acc_ref[...] += jnp.dot(p_ref[...], w_ref[...],
                            preferred_element_type=jnp.float32)

    @pl.when(k == grid_k - 1)
    def _():
        conv_st = acc_ref[...].astype(conv_ref.dtype)
        conv_ref[...] = conv_st
        c = conv_st.astype(jnp.float32)         # stats from the stored values
        s = jnp.sum(c, axis=0, keepdims=True)
        q = jnp.sum(c * c, axis=0, keepdims=True)
        psum_ref[...] = jnp.broadcast_to(s, psum_ref.shape)
        pssq_ref[...] = jnp.broadcast_to(q, pssq_ref.shape)


# ---------------------------------------------------------------------------
# Two-pass path, pass 2: streaming folded-BN (scale/shift) + ReLU.
# ---------------------------------------------------------------------------
def _bn_relu_kernel(conv_ref, scale_ref, shift_ref, o_ref):
    v = conv_ref[...].astype(jnp.float32)
    y = v * scale_ref[...] + shift_ref[...]
    o_ref[...] = jnp.maximum(y, 0.0).astype(o_ref.dtype)


# ---------- glue: im2col ------------------------------------------------------
def _im2col_nhwc(x_nhwc, kh, kw, stride):
    """(N,H,W,C) -> (N*OH*OW, kh*kw*C) patches; column ordering (kh, kw, c_in)."""
    N, H, W, C = x_nhwc.shape
    oh = (H - kh) // stride + 1
    ow = (W - kw) // stride + 1
    patches = []
    for i in range(kh):
        for j in range(kw):
            patches.append(
                x_nhwc[:, i:i + stride * oh:stride, j:j + stride * ow:stride, :])
    p = jnp.stack(patches, axis=3)              # (N, oh, ow, kh*kw, C)
    return p.reshape(N * oh * ow, kh * kw * C), oh, ow


@functools.partial(jax.jit,
                   static_argnames=("stride", "padding", "use_bf16", "force_path"))
def activated2d(x_nchw, weight, bias, gamma, beta, *, stride, padding,
                use_bf16=True, force_path=None):
    """Conv2d(stride, padding) + BatchNorm2d(training mode) + ReLU.

    x_nchw: (N, C_in, H, W)   weight: (C_out, C_in, KH, KW)
    bias/gamma/beta: (C_out,).   Returns (N, C_out, OH, OW) float32.

    The conv bias cancels exactly under training-mode BatchNorm (a per-channel
    constant is removed by the mean subtraction), so it is not used.
    """
    del bias
    N, Cin, H, W = x_nchw.shape
    Cout, _, KH, KW = weight.shape
    op_dtype = jnp.bfloat16 if use_bf16 else jnp.float32
    op_bytes = 2 if use_bf16 else 4
    conv_dtype = op_dtype            # storage dtype of conv intermediate/output
    conv_bytes = op_bytes

    # glue: NCHW -> NHWC, cast to operand dtype BEFORE pad/im2col so the
    # KH*KW-inflated patch materialization moves half the HBM bytes (bf16).
    x_nhwc = jnp.transpose(x_nchw, (0, 2, 3, 1)).astype(op_dtype)
    x_pad = jnp.pad(x_nhwc,
                    ((0, 0), (padding, padding), (padding, padding), (0, 0)))
    patches, OH, OW = _im2col_nhwc(x_pad, KH, KW, stride)        # (M, K)
    M, K = patches.shape

    # Lane / MXU friendly channel padding: 256-granular past 256 channels
    # (v6e/v7x MXU is 256 wide); K stays 128-granular because padding K
    # inflates the im2col HBM traffic and the contraction depth does not need
    # 256 alignment.
    Cp = _round_up(Cout, _LANE if Cout <= 256 else 256)
    Kp = _round_up(K, _LANE)

    TM = min(512, _round_up(M, 8))
    M_pad = _round_up(M, TM)
    grid_m = M_pad // TM

    # match patch ordering (kh, kw, c_in): (Cout,Cin,KH,KW) -> (KH,KW,Cin,Cout)
    w2d = jnp.transpose(weight, (2, 3, 1, 0)).reshape(K, Cout).astype(op_dtype)
    g2d = jnp.pad(gamma.astype(jnp.float32).reshape(1, Cout),
                  ((0, 0), (0, Cp - Cout)))
    be2d = jnp.pad(beta.astype(jnp.float32).reshape(1, Cout),
                   ((0, 0), (0, Cp - Cout)))

    # --- path choice: fused single kernel when the padded activation fits the
    # VMEM budget (removes the conv_full HBM round trip), else K-tiled 2-pass.
    fused_bytes = (2 * TM * Kp * op_bytes            # patches tile, 2 buffers
                   + 2 * Kp * Cp * op_bytes          # weight (<= 2 buffers)
                   + 2 * M_pad * Cp * conv_bytes     # resident activation block
                   + 8 * Cp * 4)                     # gamma/beta + stats
    use_fused = fused_bytes <= _FUSED_VMEM_BUDGET
    if force_path == "fused":
        use_fused = True
    elif force_path == "two_pass":
        use_fused = False

    if use_fused:
        patches_p = jnp.pad(patches, ((0, M_pad - M), (0, Kp - K)))
        w_p = jnp.pad(w2d, ((0, Kp - K), (0, Cp - Cout)))
        vmem_limit = int(min(48 * _MIB, max(32 * _MIB, 2 * fused_bytes)))

        out_full = pl.pallas_call(
            functools.partial(_fused_kernel, tm=TM, grid_m=grid_m, m_valid=M),
            out_shape=jax.ShapeDtypeStruct((M_pad, Cp), conv_dtype),
            grid=(grid_m,),
            in_specs=[
                pl.BlockSpec((TM, Kp), lambda i: (i, 0)),
                _resident_spec((Kp, Cp), lambda i: (0, 0)),
                _resident_spec((1, Cp), lambda i: (0, 0)),
                _resident_spec((1, Cp), lambda i: (0, 0)),
            ],
            out_specs=pl.BlockSpec((M_pad, Cp), lambda i: (0, 0)),
            scratch_shapes=[pltpu.VMEM((1, Cp), jnp.float32),
                            pltpu.VMEM((1, Cp), jnp.float32)],
            compiler_params=pltpu.CompilerParams(
                dimension_semantics=("arbitrary",),   # resident output + stats
                vmem_limit_bytes=vmem_limit),
            cost_estimate=pl.CostEstimate(
                flops=2 * M_pad * Kp * Cp + 4 * M_pad * Cp,
                transcendentals=0,
                bytes_accessed=(M_pad * Kp * op_bytes + Kp * Cp * op_bytes
                                + M_pad * Cp * conv_bytes)),
        )(patches_p, w_p, g2d, be2d)

    else:
        # --- K (reduction) tiling for large contraction depths ---
        if Kp > 2048:
            TK = 1024
            Kp = _round_up(K, TK)
        else:
            TK = Kp
        grid_k = Kp // TK

        # --- pass-1 M tile sized against a per-step VMEM budget ---
        if M >= 512:
            est1 = 0
            for cand in (512, 256, 128):
                TM = cand
                est1 = (2 * TM * TK * op_bytes + 2 * TK * Cp * op_bytes
                        + 2 * TM * Cp * conv_bytes + TM * Cp * 4
                        + 4 * 8 * Cp * 4)
                if est1 <= _PASS1_VMEM_BUDGET:
                    break
        else:
            TM = _round_up(M, 8)
            est1 = (2 * TM * TK * op_bytes + 2 * TK * Cp * op_bytes
                    + 2 * TM * Cp * conv_bytes + TM * Cp * 4 + 4 * 8 * Cp * 4)
        M_pad = _round_up(M, TM)
        grid_m = M_pad // TM

        patches_p = jnp.pad(patches, ((0, M_pad - M), (0, Kp - K)))
        w_p = jnp.pad(w2d, ((0, Kp - K), (0, Cp - Cout)))
        vmem1 = int(min(48 * _MIB, max(32 * _MIB, 2 * est1)))

        conv_full, psum, pssq = pl.pallas_call(
            functools.partial(_matmul_stats_kernel, grid_k=grid_k),
            out_shape=(
                jax.ShapeDtypeStruct((M_pad, Cp), conv_dtype),
                jax.ShapeDtypeStruct((grid_m * 8, Cp), jnp.float32),
                jax.ShapeDtypeStruct((grid_m * 8, Cp), jnp.float32),
            ),
            grid=(grid_m, grid_k),
            in_specs=[
                pl.BlockSpec((TM, TK), lambda i, k: (i, k)),
                pl.BlockSpec((TK, Cp), lambda i, k: (k, 0)),
            ],
            out_specs=(
                pl.BlockSpec((TM, Cp), lambda i, k: (i, 0)),
                pl.BlockSpec((8, Cp), lambda i, k: (i, 0)),
                pl.BlockSpec((8, Cp), lambda i, k: (i, 0)),
            ),
            scratch_shapes=[pltpu.VMEM((TM, Cp), jnp.float32)],
            compiler_params=pltpu.CompilerParams(
                dimension_semantics=("parallel", "arbitrary"),
                vmem_limit_bytes=vmem1),
            cost_estimate=pl.CostEstimate(
                flops=2 * M_pad * Kp * Cp,
                transcendentals=0,
                bytes_accessed=(M_pad * Kp * op_bytes + Kp * Cp * op_bytes
                                + M_pad * Cp * conv_bytes
                                + 2 * grid_m * 8 * Cp * 4)),
        )(patches_p, w_p)

        # tiny per-channel math in f32: tree-reduce the per-tile partials and
        # fold BN into a per-channel scale/shift.
        csum = jnp.sum(psum[0::8, :], axis=0, keepdims=True)
        cssq = jnp.sum(pssq[0::8, :], axis=0, keepdims=True)
        mean = csum / M
        var = jnp.maximum(cssq / M - mean * mean, 0.0)     # biased variance
        scale = g2d * jax.lax.rsqrt(var + EPS)
        shift = be2d - mean * scale

        # --- pass 2: streaming scale/shift + ReLU; larger decoupled M tile;
        # conv_full is aliased as the output buffer (same shape & dtype). ---
        gmax = max(1, 4096 // TM)
        gsz = 1
        for cand in range(min(grid_m, gmax), 0, -1):
            if grid_m % cand == 0:
                gsz = cand
                break
        TM2 = gsz * TM
        grid_m2 = grid_m // gsz
        est2 = 4 * TM2 * Cp * conv_bytes + 4 * Cp * 4
        vmem2 = int(min(48 * _MIB, max(32 * _MIB, 2 * est2)))

        out_full = pl.pallas_call(
            _bn_relu_kernel,
            out_shape=jax.ShapeDtypeStruct((M_pad, Cp), conv_dtype),
            grid=(grid_m2,),
            in_specs=[
                pl.BlockSpec((TM2, Cp), lambda i: (i, 0)),
                _resident_spec((1, Cp), lambda i: (0, 0)),
                _resident_spec((1, Cp), lambda i: (0, 0)),
            ],
            out_specs=pl.BlockSpec((TM2, Cp), lambda i: (i, 0)),
            input_output_aliases={0: 0},
            compiler_params=pltpu.CompilerParams(
                dimension_semantics=("parallel",),
                vmem_limit_bytes=vmem2),
            cost_estimate=pl.CostEstimate(
                flops=3 * M_pad * Cp,
                transcendentals=0,
                bytes_accessed=2 * M_pad * Cp * conv_bytes + 2 * Cp * 4),
        )(conv_full, scale, shift)

    # strip padding: (M_pad, Cp) -> (M, Cout) -> NHWC -> NCHW, f32 output.
    # TODO(synk): if the downstream consumer accepts NHWC / padded channels,
    # skip this crop + transpose (an extra non-lane-dense HBM pass in XLA).
    out = out_full[:M, :Cout].astype(jnp.float32).reshape(N, OH, OW, Cout)
    return jnp.transpose(out, (0, 3, 1, 2))


def _reference(x_nchw, weight, bias, gamma, beta, stride, padding):
    """Plain-JAX reference: Conv2d + training-mode BatchNorm2d + ReLU."""
    conv = jax.lax.conv_general_dilated(
        x_nchw.astype(jnp.float32), weight.astype(jnp.float32),
        window_strides=(stride, stride),
        padding=[(padding, padding), (padding, padding)],
        dimension_numbers=("NCHW", "OIHW", "NCHW"),
    ) + bias.reshape(1, -1, 1, 1)
    mean = jnp.mean(conv, axis=(0, 2, 3), keepdims=True)
    var = jnp.mean((conv - mean) ** 2, axis=(0, 2, 3), keepdims=True)
    normed = (conv - mean) * jax.lax.rsqrt(var + EPS)
    out = normed * gamma.reshape(1, -1, 1, 1) + beta.reshape(1, -1, 1, 1)
    return jnp.maximum(out, 0.0)


if __name__ == "__main__":
    # Small shapes consistent with the module: Conv2d(4 -> 8, k=3, s=1, p=1).
    N, Cin, Hs, Ws = 2, 4, 16, 16
    Cout, Ksz, stride, padding = 8, 3, 1, 1

    key = jax.random.PRNGKey(0)
    kx, kw, kb, kg, kbe = jax.random.split(key, 5)
    x = jax.random.normal(kx, (N, Cin, Hs, Ws), dtype=jnp.float32)
    weight = jax.random.normal(kw, (Cout, Cin, Ksz, Ksz), dtype=jnp.float32) * 0.1
    bias = jax.random.normal(kb, (Cout,), dtype=jnp.float32) * 0.1
    gamma = 1.0 + 0.1 * jax.random.normal(kg, (Cout,), dtype=jnp.float32)
    beta = 0.1 * jax.random.normal(kbe, (Cout,), dtype=jnp.float32)

    ref = _reference(x, weight, bias, gamma, beta, stride, padding)

    def _check(out, rtol, atol, tag):
        out = jax.block_until_ready(out)
        assert out.shape == ref.shape, (tag, out.shape)
        err = float(jnp.max(jnp.abs(out - ref)))
        assert jnp.allclose(out, ref, rtol=rtol, atol=atol), (tag, err)

    # Fused single-kernel path (conv + stats + BN + ReLU in one pallas_call).
    _check(activated2d(x, weight, bias, gamma, beta, stride=stride,
                       padding=padding, use_bf16=False, force_path="fused"),
           1e-4, 1e-4, "fused_f32")
    _check(activated2d(x, weight, bias, gamma, beta, stride=stride,
                       padding=padding, use_bf16=True, force_path="fused"),
           5e-2, 1e-1, "fused_bf16")
    # Large-M fallback path (K-tiled matmul + per-tile partial stats, then
    # a streaming BN+ReLU pass), forced here to validate it on-device too.
    _check(activated2d(x, weight, bias, gamma, beta, stride=stride,
                       padding=padding, use_bf16=False, force_path="two_pass"),
           1e-4, 1e-4, "two_pass_f32")
    _check(activated2d(x, weight, bias, gamma, beta, stride=stride,
                       padding=padding, use_bf16=True, force_path="two_pass"),
           5e-2, 1e-1, "two_pass_bf16")

    print("KERNEL_OK")
</pallas_src>

<mosaic_0001>
module attributes {stable_mosaic.version = 11 : i64} {
  func.func @_probe_kernel(%arg0: i32, %arg1: memref<8x128xf32, #tpu.memory_space<vmem>>, %arg2: memref<8x128xf32, #tpu.memory_space<vmem>>) attributes {dimension_semantics = [#tpu.dimension_semantics<arbitrary>], iteration_bounds = array<i64: 2>, scalar_prefetch = 0 : i64, scratch_operands = 0 : i64, tpu.core_type = #tpu.core_type<tc>, window_params = [{pipeline_mode = #tpu.pipeline_mode<synchronous>, transform_indices = @transform_0, window_bounds = array<i64: 8, 128>}, {pipeline_mode = #tpu.pipeline_mode<synchronous>, transform_indices = @transform_1, window_bounds = array<i64: 8, 128>}]} {
    %c0 = arith.constant 0 : index
    %c0_0 = arith.constant 0 : index
    %0 = vector.load %arg1[%c0, %c0_0] : memref<8x128xf32, #tpu.memory_space<vmem>>, vector<8x128xf32>
    %cst = arith.constant 1.000000e+00 : f32
    %1 = vector.broadcast %cst : f32 to vector<8x128xf32>
    %2 = arith.addf %0, %1 : vector<8x128xf32>
    %c0_1 = arith.constant 0 : index
    %c0_2 = arith.constant 0 : index
    %3 = vector.load %arg2[%c0_1, %c0_2] : memref<8x128xf32, #tpu.memory_space<vmem>>, vector<8x128xf32>
    tpu.vector_store %arg2[%c0_1, %c0_2], %2 {strides = array<i32>} : memref<8x128xf32, #tpu.memory_space<vmem>>, vector<8x128xf32>,
    return
  }
  func.func @transform_0(%arg0: i32) -> (i32, i32) {
    %c0_i32 = arith.constant 0 : i32
    %c0_i32_0 = arith.constant 0 : i32
    %c0_i32_1 = arith.constant 0 : i32
    return %c0_i32, %c0_i32_0 : i32, i32
  }
  func.func @transform_1(%arg0: i32) -> (i32, i32) {
    %c0_i32 = arith.constant 0 : i32
    %c0_i32_0 = arith.constant 0 : i32
    %c0_i32_1 = arith.constant 0 : i32
    return %c0_i32, %c0_i32_0 : i32, i32
  }
}

module attributes {stable_mosaic.version = 11 : i64} {
  func.func @_fused_kernel(%arg0: i32, %arg1: memref<512x128xf32, #tpu.memory_space<vmem>>, %arg2: memref<128x128xf32, #tpu.memory_space<vmem>>, %arg3: memref<1x128xf32, #tpu.memory_space<vmem>>, %arg4: memref<1x128xf32, #tpu.memory_space<vmem>>, %arg5: memref<512x128xf32, #tpu.memory_space<vmem>>, %arg6: memref<1x128xf32, #tpu.memory_space<vmem>>, %arg7: memref<1x128xf32, #tpu.memory_space<vmem>>) attributes {dimension_semantics = [#tpu.dimension_semantics<arbitrary>], iteration_bounds = array<i64: 1>, scalar_prefetch = 0 : i64, scratch_operands = 2 : i64, tpu.core_type = #tpu.core_type<tc>, window_params = [{transform_indices = @transform_0, window_bounds = array<i64: 512, 128>}, {pipeline_mode = #tpu.pipeline_mode<synchronous>, transform_indices = @transform_1, window_bounds = array<i64: 128, 128>}, {pipeline_mode = #tpu.pipeline_mode<synchronous>, transform_indices = @transform_2, window_bounds = array<i64: 1, 128>}, {pipeline_mode = #tpu.pipeline_mode<synchronous>, transform_indices = @transform_3, window_bounds = array<i64: 1, 128>}, {pipeline_mode = #tpu.pipeline_mode<synchronous>, transform_indices = @transform_4, window_bounds = array<i64: 512, 128>}]} {
    %c0_i32 = arith.constant 0 : i32
    %0 = arith.cmpi eq, %arg0, %c0_i32 : i32
    %1 = arith.extui %0 : i1 to i32
    %c0_i32_0 = arith.constant 0 : i32
    %2 = arith.cmpi ne, %1, %c0_i32_0 : i32
    scf.if %2 {
      %cst_17 = arith.constant 0.000000e+00 : f32
      %24 = vector.broadcast %cst_17 : f32 to vector<1x128xf32>
      %c0_18 = arith.constant 0 : index
      %c0_19 = arith.constant 0 : index
      %25 = vector.load %arg6[%c0_18, %c0_19] : memref<1x128xf32, #tpu.memory_space<vmem>>, vector<1x128xf32>
      tpu.vector_store %arg6[%c0_18, %c0_19], %24 {strides = array<i32>} : memref<1x128xf32, #tpu.memory_space<vmem>>, vector<1x128xf32>,
      %cst_20 = arith.constant 0.000000e+00 : f32
      %26 = vector.broadcast %cst_20 : f32 to vector<1x128xf32>
      %c0_21 = arith.constant 0 : index
      %c0_22 = arith.constant 0 : index
      %27 = vector.load %arg7[%c0_21, %c0_22] : memref<1x128xf32, #tpu.memory_space<vmem>>, vector<1x128xf32>
      tpu.vector_store %arg7[%c0_21, %c0_22], %26 {strides = array<i32>} : memref<1x128xf32, #tpu.memory_space<vmem>>, vector<1x128xf32>,
    } else {
    }
    %c0 = arith.constant 0 : index
    %c0_1 = arith.constant 0 : index
    %3 = vector.load %arg1[%c0, %c0_1] : memref<512x128xf32, #tpu.memory_space<vmem>>, vector<512x128xf32>
    %c0_2 = arith.constant 0 : index
    %c0_3 = arith.constant 0 : index
    %4 = vector.load %arg2[%c0_2, %c0_3] : memref<128x128xf32, #tpu.memory_space<vmem>>, vector<128x128xf32>
    %cst = arith.constant dense<0.000000e+00> : vector<512x128xf32>
    %5 = tpu.matmul %3, %4, %cst {dimension_numbers = #tpu.dot_dimension_numbers<[1], [0], [0], [1], [0, 0, 1, 1], [], []>} : vector<512x128xf32>, vector<128x128xf32>, vector<512x128xf32> -> vector<512x128xf32>
    %c512_i32 = arith.constant 512 : i32
    %6 = arith.muli %arg0, %c512_i32 : i32
    %7 = tpu.assume_multiple %6, 512 : i32
    %8 = arith.index_cast %7 : i32 to index
    %c0_4 = arith.constant 0 : index
    %9 = vector.load %arg5[%8, %c0_4] : memref<512x128xf32, #tpu.memory_space<vmem>>, vector<512x128xf32>
    tpu.vector_store %arg5[%8, %c0_4], %5 {strides = array<i32>} : memref<512x128xf32, #tpu.memory_space<vmem>>, vector<512x128xf32>,
    %c0_5 = arith.constant 0 : index
    %c0_6 = arith.constant 0 : index
    %10 = vector.load %arg6[%c0_5, %c0_6] : memref<1x128xf32, #tpu.memory_space<vmem>>, vector<1x128xf32>
    %cst_7 = arith.constant dense<0.000000e+00> : vector<128xf32>
    %11 = vector.multi_reduction <add>, %5, %cst_7 [0] : vector<512x128xf32> to vector<128xf32>
    %12 = vector.shape_cast %11 : vector<128xf32> to vector<1x128xf32>
    %13 = arith.addf %10, %12 : vector<1x128xf32>
    %c0_8 = arith.constant 0 : index
    %c0_9 = arith.constant 0 : index
    %14 = vector.load %arg6[%c0_8, %c0_9] : memref<1x128xf32, #tpu.memory_space<vmem>>, vector<1x128xf32>
    tpu.vector_store %arg6[%c0_8, %c0_9], %13 {strides = array<i32>} : memref<1x128xf32, #tpu.memory_space<vmem>>, vector<1x128xf32>,
    %c0_10 = arith.constant 0 : index
    %c0_11 = arith.constant 0 : index
    %15 = vector.load %arg7[%c0_10, %c0_11] : memref<1x128xf32, #tpu.memory_space<vmem>>, vector<1x128xf32>
    %16 = arith.mulf %5, %5 : vector<512x128xf32>
    %cst_12 = arith.constant dense<0.000000e+00> : vector<128xf32>
    %17 = vector.multi_reduction <add>, %16, %cst_12 [0] : vector<512x128xf32> to vector<128xf32>
    %18 = vector.shape_cast %17 : vector<128xf32> to vector<1x128xf32>
    %19 = arith.addf %15, %18 : vector<1x128xf32>
    %c0_13 = arith.constant 0 : index
    %c0_14 = arith.constant 0 : index
    %20 = vector.load %arg7[%c0_13, %c0_14] : memref<1x128xf32, #tpu.memory_space<vmem>>, vector<1x128xf32>
    tpu.vector_store %arg7[%c0_13, %c0_14], %19 {strides = array<i32>} : memref<1x128xf32, #tpu.memory_space<vmem>>, vector<1x128xf32>,
    %c0_i32_15 = arith.constant 0 : i32
    %21 = arith.cmpi eq, %arg0, %c0_i32_15 : i32
    %22 = arith.extui %21 : i1 to i32
    %c0_i32_16 = arith.constant 0 : i32
    %23 = arith.cmpi ne, %22, %c0_i32_16 : i32
    scf.if %23 {
      %c0_17 = arith.constant 0 : index
      %c0_18 = arith.constant 0 : index
      %24 = vector.load %arg6[%c0_17, %c0_18] : memref<1x128xf32, #tpu.memory_space<vmem>>, vector<1x128xf32>
      %cst_19 = arith.constant 0.001953125 : f32
      %25 = vector.broadcast %cst_19 : f32 to vector<1x128xf32>
      %26 = arith.mulf %24, %25 : vector<1x128xf32>
      %c0_20 = arith.constant 0 : index
      %c0_21 = arith.constant 0 : index
      %27 = vector.load %arg7[%c0_20, %c0_21] : memref<1x128xf32, #tpu.memory_space<vmem>>, vector<1x128xf32>
      %cst_22 = arith.constant 0.001953125 : f32
      %28 = vector.broadcast %cst_22 : f32 to vector<1x128xf32>
      %29 = arith.mulf %27, %28 : vector<1x128xf32>
      %30 = arith.mulf %26, %26 : vector<1x128xf32>
      %31 = arith.subf %29, %30 : vector<1x128xf32>
      %cst_23 = arith.constant 0.000000e+00 : f32
      %32 = vector.broadcast %cst_23 : f32 to vector<1x128xf32>
      %33 = arith.maximumf %31, %32 : vector<1x128xf32>
      %c0_24 = arith.constant 0 : index
      %c0_25 = arith.constant 0 : index
      %34 = vector.load %arg3[%c0_24, %c0_25] : memref<1x128xf32, #tpu.memory_space<vmem>>, vector<1x128xf32>
      %cst_26 = arith.constant 9.99999974E-6 : f32
      %35 = vector.broadcast %cst_26 : f32 to vector<1x128xf32>
      %36 = arith.addf %33, %35 : vector<1x128xf32>
      %37 = math.rsqrt %36 : vector<1x128xf32>
      %38 = arith.mulf %34, %37 : vector<1x128xf32>
      %c0_27 = arith.constant 0 : index
      %c0_28 = arith.constant 0 : index
      %39 = vector.load %arg4[%c0_27, %c0_28] : memref<1x128xf32, #tpu.memory_space<vmem>>, vector<1x128xf32>
      %40 = arith.mulf %26, %38 : vector<1x128xf32>
      %41 = arith.subf %39, %40 : vector<1x128xf32>
      %c0_i32_29 = arith.constant 0 : i32
      %c512_i32_30 = arith.constant 512 : i32
      %42 = arith.muli %c0_i32_29, %c512_i32_30 : i32
      %43 = tpu.assume_multiple %42, 512 : i32
      %44 = arith.index_cast %43 : i32 to index
      %c0_31 = arith.constant 0 : index
      %45 = vector.load %arg5[%44, %c0_31] : memref<512x128xf32, #tpu.memory_space<vmem>>, vector<512x128xf32>
      %46 = vector.broadcast %38 : vector<1x128xf32> to vector<512x128xf32>
      %47 = arith.mulf %45, %46 : vector<512x128xf32>
      %48 = vector.broadcast %41 : vector<1x128xf32> to vector<512x128xf32>
      %49 = arith.addf %47, %48 : vector<512x128xf32>
      %cst_32 = arith.constant 0.000000e+00 : f32
      %50 = vector.broadcast %cst_32 : f32 to vector<512x128xf32>
      %51 = arith.maximumf %49, %50 : vector<512x128xf32>
      %52 = arith.index_cast %43 : i32 to index
      %c0_33 = arith.constant 0 : index
      %53 = vector.load %arg5[%52, %c0_33] : memref<512x128xf32, #tpu.memory_space<vmem>>, vector<512x128xf32>
      tpu.vector_store %arg5[%52, %c0_33], %51 {strides = array<i32>} : memref<512x128xf32, #tpu.memory_space<vmem>>, vector<512x128xf32>,
      %c1_i32 = arith.constant 1 : i32
    } else {
    }
    return
  }
  func.func @transform_0(%arg0: i32) -> (i32, i32) {
    %c0_i32 = arith.constant 0 : i32
    %c0_i32_0 = arith.constant 0 : i32
    return %arg0, %c0_i32 : i32, i32
  }
  func.func @transform_1(%arg0: i32) -> (i32, i32) {
    %c0_i32 = arith.constant 0 : i32
    %c0_i32_0 = arith.constant 0 : i32
    %c0_i32_1 = arith.constant 0 : i32
    return %c0_i32, %c0_i32_0 : i32, i32
  }
  func.func @transform_2(%arg0: i32) -> (i32, i32) {
    %c0_i32 = arith.constant 0 : i32
    %c0_i32_0 = arith.constant 0 : i32
    %c0_i32_1 = arith.constant 0 : i32
    return %c0_i32, %c0_i32_0 : i32, i32
  }
  func.func @transform_3(%arg0: i32) -> (i32, i32) {
    %c0_i32 = arith.constant 0 : i32
    %c0_i32_0 = arith.constant 0 : i32
    %c0_i32_1 = arith.constant 0 : i32
    return %c0_i32, %c0_i32_0 : i32, i32
  }
  func.func @transform_4(%arg0: i32) -> (i32, i32) {
    %c0_i32 = arith.constant 0 : i32
    %c0_i32_0 = arith.constant 0 : i32
    %c0_i32_1 = arith.constant 0 : i32
    return %c0_i32, %c0_i32_0 : i32, i32
  }
}

</mosaic_0001>

<llo_original>
// kernel: tpu_custom_call.1
$region0: #{tpu_custom_call.1}
  #allocation0 [shape = 'u32[]', space=smem, size = 0x4, offset = 0x4, fixed_abs, tag = 'smem constant byte address 0x4 - core index']
  #allocation1 [shape = 'u32[144,128]{1,0:T(1,128)}', space=vmem, size = 0x12000, scoped, tag = 'internal scratch']
  %s0 = inlined_call_operand.hbm [shape: f32[8,128], index: 0, kind: input, shape index: {}]
  %s1 = inlined_call_operand.hbm [shape: f32[8,128], index: 1, kind: output, shape index: {}]
  %s2 = sld [smem:[#allocation0]]
  $region41: #{tpu_custom_call.1} parent=0
    _
  %s4 = ssub.s32 1, %s2
  %s5 = scalar_select 0, %s4, %s2
  $region1: #{tpu_custom_call.1} parent=0
    #allocation2 [shape = 'u8[4096]{0}', space=vmem, size = 0x1000, scoped, tag = 'input window, operand 0, single buffered']
    #allocation3 [shape = 's32[2]{0}', space=sflag, size = 0x8, scoped, tag = 'scoped memory for tpu_custom_call.1']
    #allocation4 [shape = 's32[2]{0}', space=sflag, size = 0x8, scoped, tag = 'scoped memory for tpu_custom_call.1']
    #allocation5 [shape = 'u8[4096]{0}', space=vmem, size = 0x1000, scoped, tag = 'output window, operand 0, single buffered']
    %6 = vsyncpa [#allocation3], 0
    %7 = vsyncpa [#allocation4], 0
    loop: start=0, step=1, limit=4
    $region2: #{tpu_custom_call.1} parent=1 // loop_pre_header
      _
    $region3: #{tpu_custom_call.1} parent=1 // loop_header
      %s9 = sphi 0, %s13
      %p10 = scmp.ge.s32.totalorder %s9, 4
      %s17 = sphi 0, %s17
      %s19 = sphi 0, %s17
      %s20 = sphi 0, %s19
      %s34 = sphi 0, %s20
      %s38 = sphi 0, %s38
      %s40 = sphi 0, %s38
      %s41 = sphi 0, %s40
      %s55 = sphi 0, %s41
    $region4: #{tpu_custom_call.1} parent=1 // loop_header_branch
      %12 = sbr.rel (%p10) target = $region8
    $region5: #{tpu_custom_call.1} parent=1 // loop_body
      %s14 = ssub.s32 %s9, 1
      %s15 = ssub.s32 %s9, 2
      %s16 = sadd.s32 %s9, 1
      %s18 = sadd.s32 %s17, 1
      %p21 = scmp.eq.s32.totalorder %s9, 1
      %p22 = scmp.ne.s32.totalorder %s17, %s19
      %p23 = scmp.eq.s32.totalorder %s9, 0
      %p24 = por %p22, %p23
      %p25 = scmp.ne.s32.totalorder %s17, %s19
      %p26 = scmp.eq.s32.totalorder %s14, 1
      %p27 = por %p25, %p26
      %p28 = scmp.ne.s32.totalorder %s19, %s20
      %p29 = scmp.eq.s32.totalorder %s14, 0
      %p30 = por %p28, %p29
      %p31 = scmp.ne.s32.totalorder %s19, %s20
      %p32 = scmp.eq.s32.totalorder %s15, 1
      %p33 = por %p31, %p32
      %p35 = scmp.ne.s32.totalorder %s20, %s34
      %p36 = scmp.eq.s32.totalorder %s15, 0
      %p37 = por %p35, %p36
      %s39 = sadd.s32 %s38, 1
      %p42 = scmp.eq.s32.totalorder %s9, 1
      %p43 = scmp.ne.s32.totalorder %s38, %s40
      %p44 = scmp.eq.s32.totalorder %s9, 0
      %p45 = por %p43, %p44
      %p46 = scmp.ne.s32.totalorder %s38, %s40
      %p47 = scmp.eq.s32.totalorder %s14, 1
      %p48 = por %p46, %p47
      %p49 = scmp.ne.s32.totalorder %s40, %s41
      %p50 = scmp.eq.s32.totalorder %s14, 0
      %p51 = por %p49, %p50
      %p52 = scmp.ne.s32.totalorder %s40, %s41
      %p53 = scmp.eq.s32.totalorder %s15, 1
      %p54 = por %p52, %p53
      %p56 = scmp.ne.s32.totalorder %s41, %s55
      %p57 = scmp.eq.s32.totalorder %s15, 0
      %p58 = por %p56, %p57
      %p59 = scmp.le.s32.totalorder 1, %s9
      %p60 = scmp.lt.s32.totalorder %s9, 3
      %p61 = pnand %p59, %p60
      %p62 = pneg %p61
      // Predicated region
      $region9: #{tpu_custom_call.1} parent=5 // pred_check
        _
      $region10: #{tpu_custom_call.1} parent=5 // pred_check_branch
        %64 = sbr.rel (%p61) target = $region12
      $region11: #{tpu_custom_call.1} parent=5 // pred_region
        %s65 = ssub.s32 %s9, 1
        // Predicated region
        $region13: #{tpu_custom_call.1} parent=11 // pred_check
          %p66 = pneg %p30
        $region14: #{tpu_custom_call.1} parent=11 // pred_check_branch
          %68 = sbr.rel (%p66) target = $region16
        $region15: #{tpu_custom_call.1} parent=11 // pred_region
          %s70 = ssub.s32 128, 128
          %71 = vsyncadd [#allocation3], %s70
          %s73 = sshll.u32 [#allocation2], 4
          %s74 = int_to_ptr.vmem [resolvable:$true] %s73
          %76 = dma.hbm_to_vmem [thread:$0]  %s0, 128, %s74, [#allocation3]
        $region16: #{tpu_custom_call.1} parent=11 // pred_fallthru
          _
      $region12: #{tpu_custom_call.1} parent=5 // pred_fallthru
        _
      %p77 = scmp.lt.s32.totalorder %s9, 2
      // Predicated region
      $region17: #{tpu_custom_call.1} parent=5 // pred_check
        %p78 = pneg %p77
      $region18: #{tpu_custom_call.1} parent=5 // pred_check_branch
        %80 = sbr.rel (%p78) target = $region20
      $region19: #{tpu_custom_call.1} parent=5 // pred_region
        _
      $region20: #{tpu_custom_call.1} parent=5 // pred_fallthru
        _
      %p81 = scmp.le.s32.totalorder 1, %s9
      %p82 = scmp.lt.s32.totalorder %s9, 3
      %p83 = pnand %p81, %p82
      %p84 = pneg %p83
      // Predicated region
      $region21: #{tpu_custom_call.1} parent=5 // pred_check
        _
      $region22: #{tpu_custom_call.1} parent=5 // pred_check_branch
        %86 = sbr.rel (%p83) target = $region24
      $region23: #{tpu_custom_call.1} parent=5 // pred_region
        %s87 = ssub.s32 %s9, 1
        // Predicated region
        $region25: #{tpu_custom_call.1} parent=23 // pred_check
          %p88 = pneg %p30
        $region26: #{tpu_custom_call.1} parent=23 // pred_check_branch
          %90 = sbr.rel (%p88) target = $region28
        $region27: #{tpu_custom_call.1} parent=23 // pred_region
          %91 = dma.done [#allocation3], 128
        $region28: #{tpu_custom_call.1} parent=23 // pred_fallthru
          _
        %p92 = pneg %p30
        %p93 = pneg %p27
        %p94 = pneg %p51
        %p95 = pneg %p48
        %v96 = vld [vmem:[#allocation2] sm:$0xff]
        %v97 = vadd.f32 %v96, 1.0
        %98 = vst [vmem:[#allocation5] sm:$0xff] %v97
        // Predicated region
        $region29: #{tpu_custom_call.1} parent=23 // pred_check
          %p99 = pneg %p48
        $region30: #{tpu_custom_call.1} parent=23 // pred_check_branch
          %101 = sbr.rel (%p99) target = $region32
        $region31: #{tpu_custom_call.1} parent=23 // pred_region
          %s103 = ssub.s32 128, 128
          %104 = vsyncadd [#allocation4], %s103
          %s106 = sshll.u32 [#allocation5], 4
          %s107 = int_to_ptr.vmem [resolvable:$true] %s106
          %109 = dma.vmem_to_hbm [thread:$0]  %s107, 128, %s1, [#allocation4]
        $region32: #{tpu_custom_call.1} parent=23 // pred_fallthru
          _
        // Predicated region
        $region33: #{tpu_custom_call.1} parent=23 // pred_check
          %p110 = pneg %p48
        $region34: #{tpu_custom_call.1} parent=23 // pred_check_branch
          %112 = sbr.rel (%p110) target = $region36
        $region35: #{tpu_custom_call.1} parent=23 // pred_region
          %113 = dma.done [#allocation4], 128
        $region36: #{tpu_custom_call.1} parent=23 // pred_fallthru
          _
      $region24: #{tpu_custom_call.1} parent=5 // pred_fallthru
        _
      %p114 = scmp.le.s32.totalorder 2, %s9
      // Predicated region
      $region37: #{tpu_custom_call.1} parent=5 // pred_check
        %p115 = pneg %p114
      $region38: #{tpu_custom_call.1} parent=5 // pred_check_branch
        %117 = sbr.rel (%p115) target = $region40
      $region39: #{tpu_custom_call.1} parent=5 // pred_region
        %s118 = ssub.s32 %s9, 2
      $region40: #{tpu_custom_call.1} parent=5 // pred_fallthru
        _
    $region6: #{tpu_custom_call.1} parent=1 // loop_footer
      %s13 = sadd.s32 1, %s9
    $region7: #{tpu_custom_call.1} parent=1 // loop_footer_branch
      %8 = sbr.rel target = $region3
    $region8: #{tpu_custom_call.1} parent=1 // loop_exit
      _
    %119 = vsyncpa [#allocation3], 1
    %s120 = scalar_lea.sflag [#allocation3], 1
    %121 = vsyncpa %s120, 1
    %122 = vsyncpa [#allocation4], 1
    %s123 = scalar_lea.sflag [#allocation4], 1
    %124 = vsyncpa %s123, 1

// kernel: activated2d.1
$region0: #{activated2d.1}
  #allocation0 [shape = 'u32[]', space=smem, size = 0x4, offset = 0x4, fixed_abs, tag = 'smem constant byte address 0x4 - core index']
  #allocation1 [shape = 'u32[144,128]{1,0:T(1,128)}', space=vmem, size = 0x12000, scoped, tag = 'internal scratch']
  #allocation2 [shape = 'f32[1,128]{1,0:T(1,128)}', space=vmem, size = 0x200, scoped, tag = 'scratch operand']
  #allocation3 [shape = 'f32[1,128]{1,0:T(1,128)}', space=vmem, size = 0x200, scoped, tag = 'scratch operand']
  %s0 = inlined_call_operand.vmem [shape: f32[512,128], index: 0, kind: input, shape index: {}]
  %s1 = inlined_call_operand.vmem [shape: f32[128,128], index: 1, kind: input, shape index: {}]
  %s2 = inlined_call_operand.vmem [shape: f32[1,128], index: 2, kind: input, shape index: {}]
  %s3 = inlined_call_operand.vmem [shape: f32[1,128], index: 3, kind: input, shape index: {}]
  %s4 = inlined_call_operand.vmem [shape: f32[512,128], index: 4, kind: output, shape index: {}]
  %s5 = sld [smem:[#allocation0]]
  $region34: #{activated2d.1} parent=0
    _
  %s7 = ssub.s32 1, %s5
  %s8 = scalar_select 0, %s7, %s5
  // Predicated region
  $region2: #{activated2d.1} parent=0 // pred_check
    _
  $region3: #{activated2d.1} parent=0 // pred_check_branch
    %10 = sbr.rel (0) target = $region5
  $region4: #{activated2d.1} parent=0 // pred_region
    _
  $region5: #{activated2d.1} parent=0 // pred_fallthru
    _
  // Predicated region
  $region6: #{activated2d.1} parent=0 // pred_check
    _
  $region7: #{activated2d.1} parent=0 // pred_check_branch
    %12 = sbr.rel (0) target = $region9
  $region8: #{activated2d.1} parent=0 // pred_region
    _
  $region9: #{activated2d.1} parent=0 // pred_fallthru
    _
  // Predicated region
  $region10: #{activated2d.1} parent=0 // pred_check
    _
  $region11: #{activated2d.1} parent=0 // pred_check_branch
    %14 = sbr.rel (0) target = $region13
  $region12: #{activated2d.1} parent=0 // pred_region
    _
  $region13: #{activated2d.1} parent=0 // pred_fallthru
    _
  // Predicated region
  $region14: #{activated2d.1} parent=0 // pred_check
    _
  $region15: #{activated2d.1} parent=0 // pred_check_branch
    %16 = sbr.rel (0) target = $region17
  $region16: #{activated2d.1} parent=0 // pred_region
    _
  $region17: #{activated2d.1} parent=0 // pred_fallthru
    _
  %p17 = scmp.eq.s32.totalorder 0, 0
  // Predicated region
  $region18: #{activated2d.1} parent=0 // pred_check
    %p18 = pneg %p17
  $region19: #{activated2d.1} parent=0 // pred_check_branch
    %20 = sbr.rel (%p18) target = $region21
  $region20: #{activated2d.1} parent=0 // pred_region
    %21 = vst [vmem:[#allocation2] sm:$0x1] 0.0
    %22 = vst [vmem:[#allocation3] sm:$0x1] 0.0
  $region21: #{activated2d.1} parent=0 // pred_fallthru
    _
  %v23 = vld [vmem:[%s0] sm:$0xff]
  %v24 = vld [vmem:[%s0 + $0x8] sm:$0xff]
  %v25 = vld [vmem:[%s0 + $0x10] sm:$0xff]
  %v26 = vld [vmem:[%s0 + $0x18] sm:$0xff]
  %v27 = vld [vmem:[%s0 + $0x20] sm:$0xff]
  %v28 = vld [vmem:[%s0 + $0x28] sm:$0xff]
  %v29 = vld [vmem:[%s0 + $0x30] sm:$0xff]
  %v30 = vld [vmem:[%s0 + $0x38] sm:$0xff]
  %v31 = vld [vmem:[%s0 + $0x40] sm:$0xff]
  %v32 = vld [vmem:[%s0 + $0x48] sm:$0xff]
  %v33 = vld [vmem:[%s0 + $0x50] sm:$0xff]
  %v34 = vld [vmem:[%s0 + $0x58] sm:$0xff]
  %v35 = vld [vmem:[%s0 + $0x60] sm:$0xff]
  %v36 = vld [vmem:[%s0 + $0x68] sm:$0xff]
  %v37 = vld [vmem:[%s0 + $0x70] sm:$0xff]
  %v38 = vld [vmem:[%s0 + $0x78] sm:$0xff]
  %v39 = vld [vmem:[%s0 + $0x80] sm:$0xff]
  %v40 = vld [vmem:[%s0 + $0x88] sm:$0xff]
  %v41 = vld [vmem:[%s0 + $0x90] sm:$0xff]
  %v42 = vld [vmem:[%s0 + $0x98] sm:$0xff]
  %v43 = vld [vmem:[%s0 + $0xa0] sm:$0xff]
  %v44 = vld [vmem:[%s0 + $0xa8] sm:$0xff]
  %v45 = vld [vmem:[%s0 + $0xb0] sm:$0xff]
  %v46 = vld [vmem:[%s0 + $0xb8] sm:$0xff]
  %v47 = vld [vmem:[%s0 + $0xc0] sm:$0xff]
  %v48 = vld [vmem:[%s0 + $0xc8] sm:$0xff]
  %v49 = vld [vmem:[%s0 + $0xd0] sm:$0xff]
  %v50 = vld [vmem:[%s0 + $0xd8] sm:$0xff]
  %v51 = vld [vmem:[%s0 + $0xe0] sm:$0xff]
  %v52 = vld [vmem:[%s0 + $0xe8] sm:$0xff]
  %v53 = vld [vmem:[%s0 + $0xf0] sm:$0xff]
  %v54 = vld [vmem:[%s0 + $0xf8] sm:$0xff]
  %v55 = vld [vmem:[%s0 + $0x100] sm:$0xff]
  %v56 = vld [vmem:[%s0 + $0x108] sm:$0xff]
  %v57 = vld [vmem:[%s0 + $0x110] sm:$0xff]
  %v58 = vld [vmem:[%s0 + $0x118] sm:$0xff]
  %v59 = vld [vmem:[%s0 + $0x120] sm:$0xff]
  %v60 = vld [vmem:[%s0 + $0x128] sm:$0xff]
  %v61 = vld [vmem:[%s0 + $0x130] sm:$0xff]
  %v62 = vld [vmem:[%s0 + $0x138] sm:$0xff]
  %v63 = vld [vmem:[%s0 + $0x140] sm:$0xff]
  %v64 = vld [vmem:[%s0 + $0x148] sm:$0xff]
  %v65 = vld [vmem:[%s0 + $0x150] sm:$0xff]
  %v66 = vld [vmem:[%s0 + $0x158] sm:$0xff]
  %v67 = vld [vmem:[%s0 + $0x160] sm:$0xff]
  %v68 = vld [vmem:[%s0 + $0x168] sm:$0xff]
  %v69 = vld [vmem:[%s0 + $0x170] sm:$0xff]
  %v70 = vld [vmem:[%s0 + $0x178] sm:$0xff]
  %v71 = vld [vmem:[%s0 + $0x180] sm:$0xff]
  %v72 = vld [vmem:[%s0 + $0x188] sm:$0xff]
  %v73 = vld [vmem:[%s0 + $0x190] sm:$0xff]
  %v74 = vld [vmem:[%s0 + $0x198] sm:$0xff]
  %v75 = vld [vmem:[%s0 + $0x1a0] sm:$0xff]
  %v76 = vld [vmem:[%s0 + $0x1a8] sm:$0xff]
  %v77 = vld [vmem:[%s0 + $0x1b0] sm:$0xff]
  %v78 = vld [vmem:[%s0 + $0x1b8] sm:$0xff]
  %v79 = vld [vmem:[%s0 + $0x1c0] sm:$0xff]
  %v80 = vld [vmem:[%s0 + $0x1c8] sm:$0xff]
  %v81 = vld [vmem:[%s0 + $0x1d0] sm:$0xff]
  %v82 = vld [vmem:[%s0 + $0x1d8] sm:$0xff]
  %v83 = vld [vmem:[%s0 + $0x1e0] sm:$0xff]
  %v84 = vld [vmem:[%s0 + $0x1e8] sm:$0xff]
  %v85 = vld [vmem:[%s0 + $0x1f0] sm:$0xff]
  %v86 = vld [vmem:[%s0 + $0x1f8] sm:$0xff]
  %v87 = vld [vmem:[%s1] sm:$0xff]
  %v88 = vld [vmem:[%s1 + $0x8] sm:$0xff]
  %v89 = vld [vmem:[%s1 + $0x10] sm:$0xff]
  %v90 = vld [vmem:[%s1 + $0x18] sm:$0xff]
  %v91 = vld [vmem:[%s1 + $0x20] sm:$0xff]
  %v92 = vld [vmem:[%s1 + $0x28] sm:$0xff]
  %v93 = vld [vmem:[%s1 + $0x30] sm:$0xff]
  %v94 = vld [vmem:[%s1 + $0x38] sm:$0xff]
  %v95 = vld [vmem:[%s1 + $0x40] sm:$0xff]
  %v96 = vld [vmem:[%s1 + $0x48] sm:$0xff]
  %v97 = vld [vmem:[%s1 + $0x50] sm:$0xff]
  %v98 = vld [vmem:[%s1 + $0x58] sm:$0xff]
  %v99 = vld [vmem:[%s1 + $0x60] sm:$0xff]
  %v100 = vld [vmem:[%s1 + $0x68] sm:$0xff]
  %v101 = vld [vmem:[%s1 + $0x70] sm:$0xff]
  %v102 = vld [vmem:[%s1 + $0x78] sm:$0xff]
  %103 = vmatprep.subr.mxu0 0.0
  %104 = vmatpush1.msra.mxu0 %v102
  %105 = vmatprep.subr.mxu0 0.0
  %106 = vmatpush1.msra.mxu0 %v101
  %107 = vmatprep.subr.mxu0 0.0
  %108 = vmatpush1.msra.mxu0 %v100
  %109 = vmatprep.subr.mxu0 0.0
  %110 = vmatpush1.msra.mxu0 %v99
  %111 = vmatprep.subr.mxu0 0.0
  %112 = vmatpush1.msra.mxu0 %v98
  %113 = vmatprep.subr.mxu0 0.0
  %114 = vmatpush1.msra.mxu0 %v97
  %115 = vmatprep.subr.mxu0 0.0
  %116 = vmatpush1.msra.mxu0 %v96
  %117 = vmatprep.subr.mxu0 0.0
  %118 = vmatpush1.msra.mxu0 %v95
  %119 = vmatprep.subr.mxu0 0.0
  %120 = vmatpush1.msra.mxu0 %v94
  %121 = vmatprep.subr.mxu0 0.0
  %122 = vmatpush1.msra.mxu0 %v93
  %123 = vmatprep.subr.mxu0 0.0
  %124 = vmatpush1.msra.mxu0 %v92
  %125 = vmatprep.subr.mxu0 0.0
  %126 = vmatpush1.msra.mxu0 %v91
  %127 = vmatprep.subr.mxu0 0.0
  %128 = vmatpush1.msra.mxu0 %v90
  %129 = vmatprep.subr.mxu0 0.0
  %130 = vmatpush1.msra.mxu0 %v89
  %131 = vmatprep.subr.mxu0 0.0
  %132 = vmatpush1.msra.mxu0 %v88
  %133 = vmatprep.subr.mxu0 0.0
  %134 = vmatpush1.msra.mxu0 %v87
  %135 = vmatprep.subr.mxu0 0.0
  %136 = vmatpush2.msra.mxu0 0.0
  %137 = vmatprep.subr.mxu0 0.0
  %138 = vmatpush2.msra.mxu0 0.0
  %139 = vmatprep.subr.mxu0 0.0
  %140 = vmatpush2.msra.mxu0 0.0
  %141 = vmatprep.subr.mxu0 0.0
  %142 = vmatpush2.msra.mxu0 0.0
  %143 = vmatprep.subr.mxu0 0.0
  %144 = vmatpush2.msra.mxu0 0.0
  %145 = vmatprep.subr.mxu0 0.0
  %146 = vmatpush2.msra.mxu0 0.0
  %147 = vmatprep.subr.mxu0 0.0
  %148 = vmatpush2.msra.mxu0 0.0
  %149 = vmatprep.subr.mxu0 0.0
  %150 = vmatpush2.msra.mxu0 0.0
  %151 = vmatprep.subr.mxu0 0.0
  %152 = vmatpush2.msra.mxu0 0.0
  %153 = vmatprep.subr.mxu0 0.0
  %154 = vmatpush2.msra.mxu0 0.0
  %155 = vmatprep.subr.mxu0 0.0
  %156 = vmatpush2.msra.mxu0 0.0
  %157 = vmatprep.subr.mxu0 0.0
  %158 = vmatpush2.msra.mxu0 0.0
  %159 = vmatprep.subr.mxu0 0.0
  %160 = vmatpush2.msra.mxu0 0.0
  %161 = vmatprep.subr.mxu0 0.0
  %162 = vmatpush2.msra.mxu0 0.0
  %163 = vmatprep.subr.mxu0 0.0
  %164 = vmatpush2.msra.mxu0 0.0
  %165 = vmatprep.subr.mxu0 0.0
  %166 = vmatpush2.msra.mxu0 0.0
  %167 = vmatprep.mubr.f32.mxu0 0.0
  %168 = vmatmul.mubr.f32.gmra.mxu0 %v23
  %v169 = vpop.f32.mrf.mxu0
  %v170 = vadd.f32 0.0, %v169
  %v171 = vpop.f32.mrf.mxu0
  %172 = vmatprep.mubr.f32.mxu0 0.0
  %173 = vmatmul.mubr.f32.gmra.mxu0 %v24
  %v174 = vpop.f32.mrf.mxu0
  %v175 = vadd.f32 0.0, %v174
  %v176 = vpop.f32.mrf.mxu0
  %177 = vmatprep.mubr.f32.mxu0 0.0
  %178 = vmatmul.mubr.f32.gmra.mxu0 %v25
  %v179 = vpop.f32.mrf.mxu0
  %v180 = vadd.f32 0.0, %v179
  %v181 = vpop.f32.mrf.mxu0
  %182 = vmatprep.mubr.f32.mxu0 0.0
  %183 = vmatmul.mubr.f32.gmra.mxu0 %v26
  %v184 = vpop.f32.mrf.mxu0
  %v185 = vadd.f32 0.0, %v184
  %v186 = vpop.f32.mrf.mxu0
  %187 = vmatprep.mubr.f32.mxu0 0.0
  %188 = vmatmul.mubr.f32.gmra.mxu0 %v27
  %v189 = vpop.f32.mrf.mxu0
  %v190 = vadd.f32 0.0, %v189
  %v191 = vpop.f32.mrf.mxu0
  %192 = vmatprep.mubr.f32.mxu0 0.0
  %193 = vmatmul.mubr.f32.gmra.mxu0 %v28
  %v194 = vpop.f32.mrf.mxu0
  %v195 = vadd.f32 0.0, %v194
  %v196 = vpop.f32.mrf.mxu0
  %197 = vmatprep.mubr.f32.mxu0 0.0
  %198 = vmatmul.mubr.f32.gmra.mxu0 %v29
  %v199 = vpop.f32.mrf.mxu0
  %v200 = vadd.f32 0.0, %v199
  %v201 = vpop.f32.mrf.mxu0
  %202 = vmatprep.mubr.f32.mxu0 0.0
  %203 = vmatmul.mubr.f32.gmra.mxu0 %v30
  %v204 = vpop.f32.mrf.mxu0
  %v205 = vadd.f32 0.0, %v204
  %v206 = vpop.f32.mrf.mxu0
  %207 = vmatprep.mubr.f32.mxu0 0.0
  %208 = vmatmul.mubr.f32.gmra.mxu0 %v31
  %v209 = vpop.f32.mrf.mxu0
  %v210 = vadd.f32 0.0, %v209
  %v211 = vpop.f32.mrf.mxu0
  %212 = vmatprep.mubr.f32.mxu0 0.0
  %213 = vmatmul.mubr.f32.gmra.mxu0 %v32
  %v214 = vpop.f32.mrf.mxu0
  %v215 = vadd.f32 0.0, %v214
  %v216 = vpop.f32.mrf.mxu0
  %217 = vmatprep.mubr.f32.mxu0 0.0
  %218 = vmatmul.mubr.f32.gmra.mxu0 %v33
  %v219 = vpop.f32.mrf.mxu0
  %v220 = vadd.f32 0.0, %v219
  %v221 = vpop.f32.mrf.mxu0
  %222 = vmatprep.mubr.f32.mxu0 0.0
  %223 = vmatmul.mubr.f32.gmra.mxu0 %v34
  %v224 = vpop.f32.mrf.mxu0
  %v225 = vadd.f32 0.0, %v224
  %v226 = vpop.f32.mrf.mxu0
  %227 = vmatprep.mubr.f32.mxu0 0.0
  %228 = vmatmul.mubr.f32.gmra.mxu0 %v35
  %v229 = vpop.f32.mrf.mxu0
  %v230 = vadd.f32 0.0, %v229
  %v231 = vpop.f32.mrf.mxu0
  %232 = vmatprep.mubr.f32.mxu0 0.0
  %233 = vmatmul.mubr.f32.gmra.mxu0 %v36
  %v234 = vpop.f32.mrf.mxu0
  %v235 = vadd.f32 0.0, %v234
  %v236 = vpop.f32.mrf.mxu0
  %237 = vmatprep.mubr.f32.mxu0 0.0
  %238 = vmatmul.mubr.f32.gmra.mxu0 %v37
  %v239 = vpop.f32.mrf.mxu0
  %v240 = vadd.f32 0.0, %v239
  %v241 = vpop.f32.mrf.mxu0
  %242 = vmatprep.mubr.f32.mxu0 0.0
  %243 = vmatmul.mubr.f32.gmra.mxu0 %v38
  %v244 = vpop.f32.mrf.mxu0
  %v245 = vadd.f32 0.0, %v244
  %v246 = vpop.f32.mrf.mxu0
  %247 = vmatprep.mubr.f32.mxu0 0.0
  %248 = vmatmul.mubr.f32.gmra.mxu0 %v39
  %v249 = vpop.f32.mrf.mxu0
  %v250 = vadd.f32 0.0, %v249
  %v251 = vpop.f32.mrf.mxu0
  %252 = vmatprep.mubr.f32.mxu0 0.0
  %253 = vmatmul.mubr.f32.gmra.mxu0 %v40
  %v254 = vpop.f32.mrf.mxu0
  %v255 = vadd.f32 0.0, %v254
  %v256 = vpop.f32.mrf.mxu0
  %257 = vmatprep.mubr.f32.mxu0 0.0
  %258 = vmatmul.mubr.f32.gmra.mxu0 %v41
  %v259 = vpop.f32.mrf.mxu0
  %v260 = vadd.f32 0.0, %v259
  %v261 = vpop.f32.mrf.mxu0
  %262 = vmatprep.mubr.f32.mxu0 0.0
  %263 = vmatmul.mubr.f32.gmra.mxu0 %v42
  %v264 = vpop.f32.mrf.mxu0
  %v265 = vadd.f32 0.0, %v264
  %v266 = vpop.f32.mrf.mxu0
  %267 = vmatprep.mubr.f32.mxu0 0.0
  %268 = vmatmul.mubr.f32.gmra.mxu0 %v43
  %v269 = vpop.f32.mrf.mxu0
  %v270 = vadd.f32 0.0, %v269
  %v271 = vpop.f32.mrf.mxu0
  %272 = vmatprep.mubr.f32.mxu0 0.0
  %273 = vmatmul.mubr.f32.gmra.mxu0 %v44
  %v274 = vpop.f32.mrf.mxu0
  %v275 = vadd.f32 0.0, %v274
  %v276 = vpop.f32.mrf.mxu0
  %277 = vmatprep.mubr.f32.mxu0 0.0
  %278 = vmatmul.mubr.f32.gmra.mxu0 %v45
  %v279 = vpop.f32.mrf.mxu0
  %v280 = vadd.f32 0.0, %v279
  %v281 = vpop.f32.mrf.mxu0
  %282 = vmatprep.mubr.f32.mxu0 0.0
  %283 = vmatmul.mubr.f32.gmra.mxu0 %v46
  %v284 = vpop.f32.mrf.mxu0
  %v285 = vadd.f32 0.0, %v284
  %v286 = vpop.f32.mrf.mxu0
  %287 = vmatprep.mubr.f32.mxu0 0.0
  %288 = vmatmul.mubr.f32.gmra.mxu0 %v47
  %v289 = vpop.f32.mrf.mxu0
  %v290 = vadd.f32 0.0, %v289
  %v291 = vpop.f32.mrf.mxu0
  %292 = vmatprep.mubr.f32.mxu0 0.0
  %293 = vmatmul.mubr.f32.gmra.mxu0 %v48
  %v294 = vpop.f32.mrf.mxu0
  %v295 = vadd.f32 0.0, %v294
  %v296 = vpop.f32.mrf.mxu0
  %297 = vmatprep.mubr.f32.mxu0 0.0
  %298 = vmatmul.mubr.f32.gmra.mxu0 %v49
  %v299 = vpop.f32.mrf.mxu0
  %v300 = vadd.f32 0.0, %v299
  %v301 = vpop.f32.mrf.mxu0
  %302 = vmatprep.mubr.f32.mxu0 0.0
  %303 = vmatmul.mubr.f32.gmra.mxu0 %v50
  %v304 = vpop.f32.mrf.mxu0
  %v305 = vadd.f32 0.0, %v304
  %v306 = vpop.f32.mrf.mxu0
  %307 = vmatprep.mubr.f32.mxu0 0.0
  %308 = vmatmul.mubr.f32.gmra.mxu0 %v51
  %v309 = vpop.f32.mrf.mxu0
  %v310 = vadd.f32 0.0, %v309
  %v311 = vpop.f32.mrf.mxu0
  %312 = vmatprep.mubr.f32.mxu0 0.0
  %313 = vmatmul.mubr.f32.gmra.mxu0 %v52
  %v314 = vpop.f32.mrf.mxu0
  %v315 = vadd.f32 0.0, %v314
  %v316 = vpop.f32.mrf.mxu0
  %317 = vmatprep.mubr.f32.mxu0 0.0
  %318 = vmatmul.mubr.f32.gmra.mxu0 %v53
  %v319 = vpop.f32.mrf.mxu0
  %v320 = vadd.f32 0.0, %v319
  %v321 = vpop.f32.mrf.mxu0
  %322 = vmatprep.mubr.f32.mxu0 0.0
  %323 = vmatmul.mubr.f32.gmra.mxu0 %v54
  %v324 = vpop.f32.mrf.mxu0
  %v325 = vadd.f32 0.0, %v324
  %v326 = vpop.f32.mrf.mxu0
  %327 = vmatprep.mubr.f32.mxu0 0.0
  %328 = vmatmul.mubr.f32.gmra.mxu0 %v55
  %v329 = vpop.f32.mrf.mxu0
  %v330 = vadd.f32 0.0, %v329
  %v331 = vpop.f32.mrf.mxu0
  %332 = vmatprep.mubr.f32.mxu0 0.0
  %333 = vmatmul.mubr.f32.gmra.mxu0 %v56
  %v334 = vpop.f32.mrf.mxu0
  %v335 = vadd.f32 0.0, %v334
  %v336 = vpop.f32.mrf.mxu0
  %337 = vmatprep.mubr.f32.mxu0 0.0
  %338 = vmatmul.mubr.f32.gmra.mxu0 %v57
  %v339 = vpop.f32.mrf.mxu0
  %v340 = vadd.f32 0.0, %v339
  %v341 = vpop.f32.mrf.mxu0
  %342 = vmatprep.mubr.f32.mxu0 0.0
  %343 = vmatmul.mubr.f32.gmra.mxu0 %v58
  %v344 = vpop.f32.mrf.mxu0
  %v345 = vadd.f32 0.0, %v344
  %v346 = vpop.f32.mrf.mxu0
  %347 = vmatprep.mubr.f32.mxu0 0.0
  %348 = vmatmul.mubr.f32.gmra.mxu0 %v59
  %v349 = vpop.f32.mrf.mxu0
  %v350 = vadd.f32 0.0, %v349
  %v351 = vpop.f32.mrf.mxu0
  %352 = vmatprep.mubr.f32.mxu0 0.0
  %353 = vmatmul.mubr.f32.gmra.mxu0 %v60
  %v354 = vpop.f32.mrf.mxu0
  %v355 = vadd.f32 0.0, %v354
  %v356 = vpop.f32.mrf.mxu0
  %357 = vmatprep.mubr.f32.mxu0 0.0
  %358 = vmatmul.mubr.f32.gmra.mxu0 %v61
  %v359 = vpop.f32.mrf.mxu0
  %v360 = vadd.f32 0.0, %v359
  %v361 = vpop.f32.mrf.mxu0
  %362 = vmatprep.mubr.f32.mxu0 0.0
  %363 = vmatmul.mubr.f32.gmra.mxu0 %v62
  %v364 = vpop.f32.mrf.mxu0
  %v365 = vadd.f32 0.0, %v364
  %v366 = vpop.f32.mrf.mxu0
  %367 = vmatprep.mubr.f32.mxu0 0.0
  %368 = vmatmul.mubr.f32.gmra.mxu0 %v63
  %v369 = vpop.f32.mrf.mxu0
  %v370 = vadd.f32 0.0, %v369
  %v371 = vpop.f32.mrf.mxu0
  %372 = vmatprep.mubr.f32.mxu0 0.0
  %373 = vmatmul.mubr.f32.gmra.mxu0 %v64
  %v374 = vpop.f32.mrf.mxu0
  %v375 = vadd.f32 0.0, %v374
  %v376 = vpop.f32.mrf.mxu0
  %377 = vmatprep.mubr.f32.mxu0 0.0
  %378 = vmatmul.mubr.f32.gmra.mxu0 %v65
  %v379 = vpop.f32.mrf.mxu0
  %v380 = vadd.f32 0.0, %v379
  %v381 = vpop.f32.mrf.mxu0
  %382 = vmatprep.mubr.f32.mxu0 0.0
  %383 = vmatmul.mubr.f32.gmra.mxu0 %v66
  %v384 = vpop.f32.mrf.mxu0
  %v385 = vadd.f32 0.0, %v384
  %v386 = vpop.f32.mrf.mxu0
  %387 = vmatprep.mubr.f32.mxu0 0.0
  %388 = vmatmul.mubr.f32.gmra.mxu0 %v67
  %v389 = vpop.f32.mrf.mxu0
  %v390 = vadd.f32 0.0, %v389
  %v391 = vpop.f32.mrf.mxu0
  %392 = vmatprep.mubr.f32.mxu0 0.0
  %393 = vmatmul.mubr.f32.gmra.mxu0 %v68
  %v394 = vpop.f32.mrf.mxu0
  %v395 = vadd.f32 0.0, %v394
  %v396 = vpop.f32.mrf.mxu0
  %397 = vmatprep.mubr.f32.mxu0 0.0
  %398 = vmatmul.mubr.f32.gmra.mxu0 %v69
  %v399 = vpop.f32.mrf.mxu0
  %v400 = vadd.f32 0.0, %v399
  %v401 = vpop.f32.mrf.mxu0
  %402 = vmatprep.mubr.f32.mxu0 0.0
  %403 = vmatmul.mubr.f32.gmra.mxu0 %v70
  %v404 = vpop.f32.mrf.mxu0
  %v405 = vadd.f32 0.0, %v404
  %v406 = vpop.f32.mrf.mxu0
  %407 = vmatprep.mubr.f32.mxu0 0.0
  %408 = vmatmul.mubr.f32.gmra.mxu0 %v71
  %v409 = vpop.f32.mrf.mxu0
  %v410 = vadd.f32 0.0, %v409
  %v411 = vpop.f32.mrf.mxu0
  %412 = vmatprep.mubr.f32.mxu0 0.0
  %413 = vmatmul.mubr.f32.gmra.mxu0 %v72
  %v414 = vpop.f32.mrf.mxu0
  %v415 = vadd.f32 0.0, %v414
  %v416 = vpop.f32.mrf.mxu0
  %417 = vmatprep.mubr.f32.mxu0 0.0
  %418 = vmatmul.mubr.f32.gmra.mxu0 %v73
  %v419 = vpop.f32.mrf.mxu0
  %v420 = vadd.f32 0.0, %v419
  %v421 = vpop.f32.mrf.mxu0
  %422 = vmatprep.mubr.f32.mxu0 0.0
  %423 = vmatmul.mubr.f32.gmra.mxu0 %v74
  %v424 = vpop.f32.mrf.mxu0
  %v425 = vadd.f32 0.0, %v424
  %v426 = vpop.f32.mrf.mxu0
  %427 = vmatprep.mubr.f32.mxu0 0.0
  %428 = vmatmul.mubr.f32.gmra.mxu0 %v75
  %v429 = vpop.f32.mrf.mxu0
  %v430 = vadd.f32 0.0, %v429
  %v431 = vpop.f32.mrf.mxu0
  %432 = vmatprep.mubr.f32.mxu0 0.0
  %433 = vmatmul.mubr.f32.gmra.mxu0 %v76
  %v434 = vpop.f32.mrf.mxu0
  %v435 = vadd.f32 0.0, %v434
  %v436 = vpop.f32.mrf.mxu0
  %437 = vmatprep.mubr.f32.mxu0 0.0
  %438 = vmatmul.mubr.f32.gmra.mxu0 %v77
  %v439 = vpop.f32.mrf.mxu0
  %v440 = vadd.f32 0.0, %v439
  %v441 = vpop.f32.mrf.mxu0
  %442 = vmatprep.mubr.f32.mxu0 0.0
  %443 = vmatmul.mubr.f32.gmra.mxu0 %v78
  %v444 = vpop.f32.mrf.mxu0
  %v445 = vadd.f32 0.0, %v444
  %v446 = vpop.f32.mrf.mxu0
  %447 = vmatprep.mubr.f32.mxu0 0.0
  %448 = vmatmul.mubr.f32.gmra.mxu0 %v79
  %v449 = vpop.f32.mrf.mxu0
  %v450 = vadd.f32 0.0, %v449
  %v451 = vpop.f32.mrf.mxu0
  %452 = vmatprep.mubr.f32.mxu0 0.0
  %453 = vmatmul.mubr.f32.gmra.mxu0 %v80
  %v454 = vpop.f32.mrf.mxu0
  %v455 = vadd.f32 0.0, %v454
  %v456 = vpop.f32.mrf.mxu0
  %457 = vmatprep.mubr.f32.mxu0 0.0
  %458 = vmatmul.mubr.f32.gmra.mxu0 %v81
  %v459 = vpop.f32.mrf.mxu0
  %v460 = vadd.f32 0.0, %v459
  %v461 = vpop.f32.mrf.mxu0
  %462 = vmatprep.mubr.f32.mxu0 0.0
  %463 = vmatmul.mubr.f32.gmra.mxu0 %v82
  %v464 = vpop.f32.mrf.mxu0
  %v465 = vadd.f32 0.0, %v464
  %v466 = vpop.f32.mrf.mxu0
  %467 = vmatprep.mubr.f32.mxu0 0.0
  %468 = vmatmul.mubr.f32.gmra.mxu0 %v83
  %v469 = vpop.f32.mrf.mxu0
  %v470 = vadd.f32 0.0, %v469
  %v471 = vpop.f32.mrf.mxu0
  %472 = vmatprep.mubr.f32.mxu0 0.0
  %473 = vmatmul.mubr.f32.gmra.mxu0 %v84
  %v474 = vpop.f32.mrf.mxu0
  %v475 = vadd.f32 0.0, %v474
  %v476 = vpop.f32.mrf.mxu0
  %477 = vmatprep.mubr.f32.mxu0 0.0
  %478 = vmatmul.mubr.f32.gmra.mxu0 %v85
  %v479 = vpop.f32.mrf.mxu0
  %v480 = vadd.f32 0.0, %v479
  %v481 = vpop.f32.mrf.mxu0
  %482 = vmatprep.mubr.f32.mxu0 0.0
  %483 = vmatmul.mubr.f32.gmra.mxu0 %v86
  %v484 = vpop.f32.mrf.mxu0
  %v485 = vadd.f32 0.0, %v484
  %v486 = vpop.f32.mrf.mxu0
  %487 = vdwg.mxu0
  %s488 = smul.u32 0, 512
  %s489 = scalar_lea.vmem %s4, %s488
  %490 = vst [vmem:[%s489] sm:$0xff] %v170
  %491 = vst [vmem:[%s489 + $0x8] sm:$0xff] %v175
  %492 = vst [vmem:[%s489 + $0x10] sm:$0xff] %v180
  %493 = vst [vmem:[%s489 + $0x18] sm:$0xff] %v185
  %494 = vst [vmem:[%s489 + $0x20] sm:$0xff] %v190
  %495 = vst [vmem:[%s489 + $0x28] sm:$0xff] %v195
  %496 = vst [vmem:[%s489 + $0x30] sm:$0xff] %v200
  %497 = vst [vmem:[%s489 + $0x38] sm:$0xff] %v205
  %498 = vst [vmem:[%s489 + $0x40] sm:$0xff] %v210
  %499 = vst [vmem:[%s489 + $0x48] sm:$0xff] %v215
  %500 = vst [vmem:[%s489 + $0x50] sm:$0xff] %v220
  %501 = vst [vmem:[%s489 + $0x58] sm:$0xff] %v225
  %502 = vst [vmem:[%s489 + $0x60] sm:$0xff] %v230
  %503 = vst [vmem:[%s489 + $0x68] sm:$0xff] %v235
  %504 = vst [vmem:[%s489 + $0x70] sm:$0xff] %v240
  %505 = vst [vmem:[%s489 + $0x78] sm:$0xff] %v245
  %506 = vst [vmem:[%s489 + $0x80] sm:$0xff] %v250
  %507 = vst [vmem:[%s489 + $0x88] sm:$0xff] %v255
  %508 = vst [vmem:[%s489 + $0x90] sm:$0xff] %v260
  %509 = vst [vmem:[%s489 + $0x98] sm:$0xff] %v265
  %510 = vst [vmem:[%s489 + $0xa0] sm:$0xff] %v270
  %511 = vst [vmem:[%s489 + $0xa8] sm:$0xff] %v275
  %512 = vst [vmem:[%s489 + $0xb0] sm:$0xff] %v280
  %513 = vst [vmem:[%s489 + $0xb8] sm:$0xff] %v285
  %514 = vst [vmem:[%s489 + $0xc0] sm:$0xff] %v290
  %515 = vst [vmem:[%s489 + $0xc8] sm:$0xff] %v295
  %516 = vst [vmem:[%s489 + $0xd0] sm:$0xff] %v300
  %517 = vst [vmem:[%s489 + $0xd8] sm:$0xff] %v305
  %518 = vst [vmem:[%s489 + $0xe0] sm:$0xff] %v310
  %519 = vst [vmem:[%s489 + $0xe8] sm:$0xff] %v315
  %520 = vst [vmem:[%s489 + $0xf0] sm:$0xff] %v320
  %521 = vst [vmem:[%s489 + $0xf8] sm:$0xff] %v325
  %522 = vst [vmem:[%s489 + $0x100] sm:$0xff] %v330
  %523 = vst [vmem:[%s489 + $0x108] sm:$0xff] %v335
  %524 = vst [vmem:[%s489 + $0x110] sm:$0xff] %v340
  %525 = vst [vmem:[%s489 + $0x118] sm:$0xff] %v345
  %526 = vst [vmem:[%s489 + $0x120] sm:$0xff] %v350
  %527 = vst [vmem:[%s489 + $0x128] sm:$0xff] %v355
  %528 = vst [vmem:[%s489 + $0x130] sm:$0xff] %v360
  %529 = vst [vmem:[%s489 + $0x138] sm:$0xff] %v365
  %530 = vst [vmem:[%s489 + $0x140] sm:$0xff] %v370
  %531 = vst [vmem:[%s489 + $0x148] sm:$0xff] %v375
  %532 = vst [vmem:[%s489 + $0x150] sm:$0xff] %v380
  %533 = vst [vmem:[%s489 + $0x158] sm:$0xff] %v385
  %534 = vst [vmem:[%s489 + $0x160] sm:$0xff] %v390
  %535 = vst [vmem:[%s489 + $0x168] sm:$0xff] %v395
  %536 = vst [vmem:[%s489 + $0x170] sm:$0xff] %v400
  %537 = vst [vmem:[%s489 + $0x178] sm:$0xff] %v405
  %538 = vst [vmem:[%s489 + $0x180] sm:$0xff] %v410
  %539 = vst [vmem:[%s489 + $0x188] sm:$0xff] %v415
  %540 = vst [vmem:[%s489 + $0x190] sm:$0xff] %v420
  %541 = vst [vmem:[%s489 + $0x198] sm:$0xff] %v425
  %542 = vst [vmem:[%s489 + $0x1a0] sm:$0xff] %v430
  %543 = vst [vmem:[%s489 + $0x1a8] sm:$0xff] %v435
  %544 = vst [vmem:[%s489 + $0x1b0] sm:$0xff] %v440
  %545 = vst [vmem:[%s489 + $0x1b8] sm:$0xff] %v445
  %546 = vst [vmem:[%s489 + $0x1c0] sm:$0xff] %v450
  %547 = vst [vmem:[%s489 + $0x1c8] sm:$0xff] %v455
  %548 = vst [vmem:[%s489 + $0x1d0] sm:$0xff] %v460
  %549 = vst [vmem:[%s489 + $0x1d8] sm:$0xff] %v465
  %550 = vst [vmem:[%s489 + $0x1e0] sm:$0xff] %v470
  %551 = vst [vmem:[%s489 + $0x1e8] sm:$0xff] %v475
  %552 = vst [vmem:[%s489 + $0x1f0] sm:$0xff] %v480
  %553 = vst [vmem:[%s489 + $0x1f8] sm:$0xff] %v485
  %v554 = vld [vmem:[#allocation2] sm:$0x1]
  %v555 = vadd.f32 %v170, %v175
  %v556 = vadd.f32 %v555, %v180
  %v557 = vadd.f32 %v556, %v185
  %v558 = vadd.f32 %v557, %v190
  %v559 = vadd.f32 %v558, %v195
  %v560 = vadd.f32 %v559, %v200
  %v561 = vadd.f32 %v560, %v205
  %v562 = vadd.f32 %v561, %v210
  %v563 = vadd.f32 %v562, %v215
  %v564 = vadd.f32 %v563, %v220
  %v565 = vadd.f32 %v564, %v225
  %v566 = vadd.f32 %v565, %v230
  %v567 = vadd.f32 %v566, %v235
  %v568 = vadd.f32 %v567, %v240
  %v569 = vadd.f32 %v568, %v245
  %v570 = vadd.f32 %v569, %v250
  %v571 = vadd.f32 %v570, %v255
  %v572 = vadd.f32 %v571, %v260
  %v573 = vadd.f32 %v572, %v265
  %v574 = vadd.f32 %v573, %v270
  %v575 = vadd.f32 %v574, %v275
  %v576 = vadd.f32 %v575, %v280
  %v577 = vadd.f32 %v576, %v285
  %v578 = vadd.f32 %v577, %v290
  %v579 = vadd.f32 %v578, %v295
  %v580 = vadd.f32 %v579, %v300
  %v581 = vadd.f32 %v580, %v305
  %v582 = vadd.f32 %v581, %v310
  %v583 = vadd.f32 %v582, %v315
  %v584 = vadd.f32 %v583, %v320
  %v585 = vadd.f32 %v584, %v325
  %v586 = vadd.f32 %v585, %v330
  %v587 = vadd.f32 %v586, %v335
  %v588 = vadd.f32 %v587, %v340
  %v589 = vadd.f32 %v588, %v345
  %v590 = vadd.f32 %v589, %v350
  %v591 = vadd.f32 %v590, %v355
  %v592 = vadd.f32 %v591, %v360
  %v593 = vadd.f32 %v592, %v365
  %v594 = vadd.f32 %v593, %v370
  %v595 = vadd.f32 %v594, %v375
  %v596 = vadd.f32 %v595, %v380
  %v597 = vadd.f32 %v596, %v385
  %v598 = vadd.f32 %v597, %v390
  %v599 = vadd.f32 %v598, %v395
  %v600 = vadd.f32 %v599, %v400
  %v601 = vadd.f32 %v600, %v405
  %v602 = vadd.f32 %v601, %v410
  %v603 = vadd.f32 %v602, %v415
  %v604 = vadd.f32 %v603, %v420
  %v605 = vadd.f32 %v604, %v425
  %v606 = vadd.f32 %v605, %v430
  %v607 = vadd.f32 %v606, %v435
  %v608 = vadd.f32 %v607, %v440
  %v609 = vadd.f32 %v608, %v445
  %v610 = vadd.f32 %v609, %v450
  %v611 = vadd.f32 %v610, %v455
  %v612 = vadd.f32 %v611, %v460
  %v613 = vadd.f32 %v612, %v465
  %v614 = vadd.f32 %v613, %v470
  %v615 = vadd.f32 %v614, %v475
  %v616 = vadd.f32 %v615, %v480
  %v617 = vadd.f32 %v616, %v485
  %v618 = vrot.slane %v617, 4
  %v619 = vadd.f32 %v617, %v618
  %v620 = vrot.slane %v619, 2
  %v621 = vadd.f32 %v619, %v620
  %v622 = vrot.slane %v621, 1
  %v623 = vadd.f32 %v621, %v622
  %v624 = vadd.f32 %v554, %v623
  %625 = vst [vmem:[#allocation2] sm:$0x1] %v624
  %v626 = vld [vmem:[#allocation3] sm:$0x1]
  %v627 = vmul.f32 %v170, %v170
  %v628 = vmul.f32 %v175, %v175
  %v629 = vmul.f32 %v180, %v180
  %v630 = vmul.f32 %v185, %v185
  %v631 = vmul.f32 %v190, %v190
  %v632 = vmul.f32 %v195, %v195
  %v633 = vmul.f32 %v200, %v200
  %v634 = vmul.f32 %v205, %v205
  %v635 = vmul.f32 %v210, %v210
  %v636 = vmul.f32 %v215, %v215
  %v637 = vmul.f32 %v220, %v220
  %v638 = vmul.f32 %v225, %v225
  %v639 = vmul.f32 %v230, %v230
  %v640 = vmul.f32 %v235, %v235
  %v641 = vmul.f32 %v240, %v240
  %v642 = vmul.f32 %v245, %v245
  %v643 = vmul.f32 %v250, %v250
  %v644 = vmul.f32 %v255, %v255
  %v645 = vmul.f32 %v260, %v260
  %v646 = vmul.f32 %v265, %v265
  %v647 = vmul.f32 %v270, %v270
  %v648 = vmul.f32 %v275, %v275
  %v649 = vmul.f32 %v280, %v280
  %v650 = vmul.f32 %v285, %v285
  %v651 = vmul.f32 %v290, %v290
  %v652 = vmul.f32 %v295, %v295
  %v653 = vmul.f32 %v300, %v300
  %v654 = vmul.f32 %v305, %v305
  %v655 = vmul.f32 %v310, %v310
  %v656 = vmul.f32 %v315, %v315
  %v657 = vmul.f32 %v320, %v320
  %v658 = vmul.f32 %v325, %v325
  %v659 = vmul.f32 %v330, %v330
  %v660 = vmul.f32 %v335, %v335
  %v661 = vmul.f32 %v340, %v340
  %v662 = vmul.f32 %v345, %v345
  %v663 = vmul.f32 %v350, %v350
  %v664 = vmul.f32 %v355, %v355
  %v665 = vmul.f32 %v360, %v360
  %v666 = vmul.f32 %v365, %v365
  %v667 = vmul.f32 %v370, %v370
  %v668 = vmul.f32 %v375, %v375
  %v669 = vmul.f32 %v380, %v380
  %v670 = vmul.f32 %v385, %v385
  %v671 = vmul.f32 %v390, %v390
  %v672 = vmul.f32 %v395, %v395
  %v673 = vmul.f32 %v400, %v400
  %v674 = vmul.f32 %v405, %v405
  %v675 = vmul.f32 %v410, %v410
  %v676 = vmul.f32 %v415, %v415
  %v677 = vmul.f32 %v420, %v420
  %v678 = vmul.f32 %v425, %v425
  %v679 = vmul.f32 %v430, %v430
  %v680 = vmul.f32 %v435, %v435
  %v681 = vmul.f32 %v440, %v440
  %v682 = vmul.f32 %v445, %v445
  %v683 = vmul.f32 %v450, %v450
  %v684 = vmul.f32 %v455, %v455
  %v685 = vmul.f32 %v460, %v460
  %v686 = vmul.f32 %v465, %v465
  %v687 = vmul.f32 %v470, %v470
  %v688 = vmul.f32 %v475, %v475
  %v689 = vmul.f32 %v480, %v480
  %v690 = vmul.f32 %v485, %v485
  %v691 = vadd.f32 %v627, %v628
  %v692 = vadd.f32 %v691, %v629
  %v693 = vadd.f32 %v692, %v630
  %v694 = vadd.f32 %v693, %v631
  %v695 = vadd.f32 %v694, %v632
  %v696 = vadd.f32 %v695, %v633
  %v697 = vadd.f32 %v696, %v634
  %v698 = vadd.f32 %v697, %v635
  %v699 = vadd.f32 %v698, %v636
  %v700 = vadd.f32 %v699, %v637
  %v701 = vadd.f32 %v700, %v638
  %v702 = vadd.f32 %v701, %v639
  %v703 = vadd.f32 %v702, %v640
  %v704 = vadd.f32 %v703, %v641
  %v705 = vadd.f32 %v704, %v642
  %v706 = vadd.f32 %v705, %v643
  %v707 = vadd.f32 %v706, %v644
  %v708 = vadd.f32 %v707, %v645
  %v709 = vadd.f32 %v708, %v646
  %v710 = vadd.f32 %v709, %v647
  %v711 = vadd.f32 %v710, %v648
  %v712 = vadd.f32 %v711, %v649
  %v713 = vadd.f32 %v712, %v650
  %v714 = vadd.f32 %v713, %v651
  %v715 = vadd.f32 %v714, %v652
  %v716 = vadd.f32 %v715, %v653
  %v717 = vadd.f32 %v716, %v654
  %v718 = vadd.f32 %v717, %v655
  %v719 = vadd.f32 %v718, %v656
  %v720 = vadd.f32 %v719, %v657
  %v721 = vadd.f32 %v720, %v658
  %v722 = vadd.f32 %v721, %v659
  %v723 = vadd.f32 %v722, %v660
  %v724 = vadd.f32 %v723, %v661
  %v725 = vadd.f32 %v724, %v662
  %v726 = vadd.f32 %v725, %v663
  %v727 = vadd.f32 %v726, %v664
  %v728 = vadd.f32 %v727, %v665
  %v729 = vadd.f32 %v728, %v666
  %v730 = vadd.f32 %v729, %v667
  %v731 = vadd.f32 %v730, %v668
  %v732 = vadd.f32 %v731, %v669
  %v733 = vadd.f32 %v732, %v670
  %v734 = vadd.f32 %v733, %v671
  %v735 = vadd.f32 %v734, %v672
  %v736 = vadd.f32 %v735, %v673
  %v737 = vadd.f32 %v736, %v674
  %v738 = vadd.f32 %v737, %v675
  %v739 = vadd.f32 %v738, %v676
  %v740 = vadd.f32 %v739, %v677
  %v741 = vadd.f32 %v740, %v678
  %v742 = vadd.f32 %v741, %v679
  %v743 = vadd.f32 %v742, %v680
  %v744 = vadd.f32 %v743, %v681
  %v745 = vadd.f32 %v744, %v682
  %v746 = vadd.f32 %v745, %v683
  %v747 = vadd.f32 %v746, %v684
  %v748 = vadd.f32 %v747, %v685
  %v749 = vadd.f32 %v748, %v686
  %v750 = vadd.f32 %v749, %v687
  %v751 = vadd.f32 %v750, %v688
  %v752 = vadd.f32 %v751, %v689
  %v753 = vadd.f32 %v752, %v690
  %v754 = vrot.slane %v753, 4
  %v755 = vadd.f32 %v753, %v754
  %v756 = vrot.slane %v755, 2
  %v757 = vadd.f32 %v755, %v756
  %v758 = vrot.slane %v757, 1
  %v759 = vadd.f32 %v757, %v758
  %v760 = vadd.f32 %v626, %v759
  %761 = vst [vmem:[#allocation3] sm:$0x1] %v760
  // Predicated region
  $region22: #{activated2d.1} parent=0 // pred_check
    %p762 = pneg %p17
  $region23: #{activated2d.1} parent=0 // pred_check_branch
    %764 = sbr.rel (%p762) target = $region25
  $region24: #{activated2d.1} parent=0 // pred_region
    %v765 = vld [vmem:[#allocation2] sm:$0x1]
    %v766 = vmul.f32 %v765, 0.001953125
    %v767 = vld [vmem:[#allocation3] sm:$0x1]
    %v768 = vmul.f32 %v767, 0.001953125
    %v769 = vmul.f32 %v766, %v766
    %v770 = vsub.f32 %v768, %v769
    %v771 = vmax.f32 %v770, 0.0
    %v772 = vld [vmem:[%s2] sm:$0x1]
    %v773 = vadd.f32 %v771, 1e-05
    %v774 = vrsqrt.pop %v773
    %v775 = vmul.f32 %v772, %v774
    %v776 = vld [vmem:[%s3] sm:$0x1]
    %v777 = vmul.f32 %v766, %v775
    %v778 = vsub.f32 %v776, %v777
    %v779 = vld [vmem:[%s4] sm:$0xff]
    %v780 = vld [vmem:[%s4 + $0x8] sm:$0xff]
    %v781 = vld [vmem:[%s4 + $0x10] sm:$0xff]
    %v782 = vld [vmem:[%s4 + $0x18] sm:$0xff]
    %v783 = vld [vmem:[%s4 + $0x20] sm:$0xff]
    %v784 = vld [vmem:[%s4 + $0x28] sm:$0xff]
    %v785 = vld [vmem:[%s4 + $0x30] sm:$0xff]
    %v786 = vld [vmem:[%s4 + $0x38] sm:$0xff]
    %v787 = vld [vmem:[%s4 + $0x40] sm:$0xff]
    %v788 = vld [vmem:[%s4 + $0x48] sm:$0xff]
    %v789 = vld [vmem:[%s4 + $0x50] sm:$0xff]
    %v790 = vld [vmem:[%s4 + $0x58] sm:$0xff]
    %v791 = vld [vmem:[%s4 + $0x60] sm:$0xff]
    %v792 = vld [vmem:[%s4 + $0x68] sm:$0xff]
    %v793 = vld [vmem:[%s4 + $0x70] sm:$0xff]
    %v794 = vld [vmem:[%s4 + $0x78] sm:$0xff]
    %v795 = vld [vmem:[%s4 + $0x80] sm:$0xff]
    %v796 = vld [vmem:[%s4 + $0x88] sm:$0xff]
    %v797 = vld [vmem:[%s4 + $0x90] sm:$0xff]
    %v798 = vld [vmem:[%s4 + $0x98] sm:$0xff]
    %v799 = vld [vmem:[%s4 + $0xa0] sm:$0xff]
    %v800 = vld [vmem:[%s4 + $0xa8] sm:$0xff]
    %v801 = vld [vmem:[%s4 + $0xb0] sm:$0xff]
    %v802 = vld [vmem:[%s4 + $0xb8] sm:$0xff]
    %v803 = vld [vmem:[%s4 + $0xc0] sm:$0xff]
    %v804 = vld [vmem:[%s4 + $0xc8] sm:$0xff]
    %v805 = vld [vmem:[%s4 + $0xd0] sm:$0xff]
    %v806 = vld [vmem:[%s4 + $0xd8] sm:$0xff]
    %v807 = vld [vmem:[%s4 + $0xe0] sm:$0xff]
    %v808 = vld [vmem:[%s4 + $0xe8] sm:$0xff]
    %v809 = vld [vmem:[%s4 + $0xf0] sm:$0xff]
    %v810 = vld [vmem:[%s4 + $0xf8] sm:$0xff]
    %v811 = vld [vmem:[%s4 + $0x100] sm:$0xff]
    %v812 = vld [vmem:[%s4 + $0x108] sm:$0xff]
    %v813 = vld [vmem:[%s4 + $0x110] sm:$0xff]
    %v814 = vld [vmem:[%s4 + $0x118] sm:$0xff]
    %v815 = vld [vmem:[%s4 + $0x120] sm:$0xff]
    %v816 = vld [vmem:[%s4 + $0x128] sm:$0xff]
    %v817 = vld [vmem:[%s4 + $0x130] sm:$0xff]
    %v818 = vld [vmem:[%s4 + $0x138] sm:$0xff]
    %v819 = vld [vmem:[%s4 + $0x140] sm:$0xff]
    %v820 = vld [vmem:[%s4 + $0x148] sm:$0xff]
    %v821 = vld [vmem:[%s4 + $0x150] sm:$0xff]
    %v822 = vld [vmem:[%s4 + $0x158] sm:$0xff]
    %v823 = vld [vmem:[%s4 + $0x160] sm:$0xff]
    %v824 = vld [vmem:[%s4 + $0x168] sm:$0xff]
    %v825 = vld [vmem:[%s4 + $0x170] sm:$0xff]
    %v826 = vld [vmem:[%s4 + $0x178] sm:$0xff]
    %v827 = vld [vmem:[%s4 + $0x180] sm:$0xff]
    %v828 = vld [vmem:[%s4 + $0x188] sm:$0xff]
    %v829 = vld [vmem:[%s4 + $0x190] sm:$0xff]
    %v830 = vld [vmem:[%s4 + $0x198] sm:$0xff]
    %v831 = vld [vmem:[%s4 + $0x1a0] sm:$0xff]
    %v832 = vld [vmem:[%s4 + $0x1a8] sm:$0xff]
    %v833 = vld [vmem:[%s4 + $0x1b0] sm:$0xff]
    %v834 = vld [vmem:[%s4 + $0x1b8] sm:$0xff]
    %v835 = vld [vmem:[%s4 + $0x1c0] sm:$0xff]
    %v836 = vld [vmem:[%s4 + $0x1c8] sm:$0xff]
    %v837 = vld [vmem:[%s4 + $0x1d0] sm:$0xff]
    %v838 = vld [vmem:[%s4 + $0x1d8] sm:$0xff]
    %v839 = vld [vmem:[%s4 + $0x1e0] sm:$0xff]
    %v840 = vld [vmem:[%s4 + $0x1e8] sm:$0xff]
    %v841 = vld [vmem:[%s4 + $0x1f0] sm:$0xff]
    %v842 = vld [vmem:[%s4 + $0x1f8] sm:$0xff]
    %v844 = vlaneseq
    %v845 = vshrl.u32 %v844, 7
    %v846 = vsub.s32 0, %v845
    %v847 = vrot.slane %v775, %v846
    %v849 = vmul.f32 %v779, %v847
    %v850 = vmul.f32 %v780, %v847
    %v851 = vmul.f32 %v781, %v847
    %v852 = vmul.f32 %v782, %v847
    %v853 = vmul.f32 %v783, %v847
    %v854 = vmul.f32 %v784, %v847
    %v855 = vmul.f32 %v785, %v847
    %v856 = vmul.f32 %v786, %v847
    %v857 = vmul.f32 %v787, %v847
    %v858 = vmul.f32 %v788, %v847
    %v859 = vmul.f32 %v789, %v847
    %v860 = vmul.f32 %v790, %v847
    %v861 = vmul.f32 %v791, %v847
    %v862 = vmul.f32 %v792, %v847
    %v863 = vmul.f32 %v793, %v847
    %v864 = vmul.f32 %v794, %v847
    %v865 = vmul.f32 %v795, %v847
    %v866 = vmul.f32 %v796, %v847
    %v867 = vmul.f32 %v797, %v847
    %v868 = vmul.f32 %v798, %v847
    %v869 = vmul.f32 %v799, %v847
    %v870 = vmul.f32 %v800, %v847
    %v871 = vmul.f32 %v801, %v847
    %v872 = vmul.f32 %v802, %v847
    %v873 = vmul.f32 %v803, %v847
    %v874 = vmul.f32 %v804, %v847
    %v875 = vmul.f32 %v805, %v847
    %v876 = vmul.f32 %v806, %v847
    %v877 = vmul.f32 %v807, %v847
    %v878 = vmul.f32 %v808, %v847
    %v879 = vmul.f32 %v809, %v847
    %v880 = vmul.f32 %v810, %v847
    %v881 = vmul.f32 %v811, %v847
    %v882 = vmul.f32 %v812, %v847
    %v883 = vmul.f32 %v813, %v847
    %v884 = vmul.f32 %v814, %v847
    %v885 = vmul.f32 %v815, %v847
    %v886 = vmul.f32 %v816, %v847
    %v887 = vmul.f32 %v817, %v847
    %v888 = vmul.f32 %v818, %v847
    %v889 = vmul.f32 %v819, %v847
    %v890 = vmul.f32 %v820, %v847
    %v891 = vmul.f32 %v821, %v847
    %v892 = vmul.f32 %v822, %v847
    %v893 = vmul.f32 %v823, %v847
    %v894 = vmul.f32 %v824, %v847
    %v895 = vmul.f32 %v825, %v847
    %v896 = vmul.f32 %v826, %v847
    %v897 = vmul.f32 %v827, %v847
    %v898 = vmul.f32 %v828, %v847
    %v899 = vmul.f32 %v829, %v847
    %v900 = vmul.f32 %v830, %v847
    %v901 = vmul.f32 %v831, %v847
    %v902 = vmul.f32 %v832, %v847
    %v903 = vmul.f32 %v833, %v847
    %v904 = vmul.f32 %v834, %v847
    %v905 = vmul.f32 %v835, %v847
    %v906 = vmul.f32 %v836, %v847
    %v907 = vmul.f32 %v837, %v847
    %v908 = vmul.f32 %v838, %v847
    %v909 = vmul.f32 %v839, %v847
    %v910 = vmul.f32 %v840, %v847
    %v911 = vmul.f32 %v841, %v847
    %v912 = vmul.f32 %v842, %v847
    %v914 = vlaneseq
    %v915 = vshrl.u32 %v914, 7
    %v916 = vsub.s32 0, %v915
    %v917 = vrot.slane %v778, %v916
    %v919 = vadd.f32 %v849, %v917
    %v920 = vadd.f32 %v850, %v917
    %v921 = vadd.f32 %v851, %v917
    %v922 = vadd.f32 %v852, %v917
    %v923 = vadd.f32 %v853, %v917
    %v924 = vadd.f32 %v854, %v917
    %v925 = vadd.f32 %v855, %v917
    %v926 = vadd.f32 %v856, %v917
    %v927 = vadd.f32 %v857, %v917
    %v928 = vadd.f32 %v858, %v917
    %v929 = vadd.f32 %v859, %v917
    %v930 = vadd.f32 %v860, %v917
    %v931 = vadd.f32 %v861, %v917
    %v932 = vadd.f32 %v862, %v917
    %v933 = vadd.f32 %v863, %v917
    %v934 = vadd.f32 %v864, %v917
    %v935 = vadd.f32 %v865, %v917
    %v936 = vadd.f32 %v866, %v917
    %v937 = vadd.f32 %v867, %v917
    %v938 = vadd.f32 %v868, %v917
    %v939 = vadd.f32 %v869, %v917
    %v940 = vadd.f32 %v870, %v917
    %v941 = vadd.f32 %v871, %v917
    %v942 = vadd.f32 %v872, %v917
    %v943 = vadd.f32 %v873, %v917
    %v944 = vadd.f32 %v874, %v917
    %v945 = vadd.f32 %v875, %v917
    %v946 = vadd.f32 %v876, %v917
    %v947 = vadd.f32 %v877, %v917
    %v948 = vadd.f32 %v878, %v917
    %v949 = vadd.f32 %v879, %v917
    %v950 = vadd.f32 %v880, %v917
    %v951 = vadd.f32 %v881, %v917
    %v952 = vadd.f32 %v882, %v917
    %v953 = vadd.f32 %v883, %v917
    %v954 = vadd.f32 %v884, %v917
    %v955 = vadd.f32 %v885, %v917
    %v956 = vadd.f32 %v886, %v917
    %v957 = vadd.f32 %v887, %v917
    %v958 = vadd.f32 %v888, %v917
    %v959 = vadd.f32 %v889, %v917
    %v960 = vadd.f32 %v890, %v917
    %v961 = vadd.f32 %v891, %v917
    %v962 = vadd.f32 %v892, %v917
    %v963 = vadd.f32 %v893, %v917
    %v964 = vadd.f32 %v894, %v917
    %v965 = vadd.f32 %v895, %v917
    %v966 = vadd.f32 %v896, %v917
    %v967 = vadd.f32 %v897, %v917
    %v968 = vadd.f32 %v898, %v917
    %v969 = vadd.f32 %v899, %v917
    %v970 = vadd.f32 %v900, %v917
    %v971 = vadd.f32 %v901, %v917
    %v972 = vadd.f32 %v902, %v917
    %v973 = vadd.f32 %v903, %v917
    %v974 = vadd.f32 %v904, %v917
    %v975 = vadd.f32 %v905, %v917
    %v976 = vadd.f32 %v906, %v917
    %v977 = vadd.f32 %v907, %v917
    %v978 = vadd.f32 %v908, %v917
    %v979 = vadd.f32 %v909, %v917
    %v980 = vadd.f32 %v910, %v917
    %v981 = vadd.f32 %v911, %v917
    %v982 = vadd.f32 %v912, %v917
    %v983 = vmax.f32 %v919, 0.0
    %v984 = vmax.f32 %v920, 0.0
    %v985 = vmax.f32 %v921, 0.0
    %v986 = vmax.f32 %v922, 0.0
    %v987 = vmax.f32 %v923, 0.0
    %v988 = vmax.f32 %v924, 0.0
    %v989 = vmax.f32 %v925, 0.0
    %v990 = vmax.f32 %v926, 0.0
    %v991 = vmax.f32 %v927, 0.0
    %v992 = vmax.f32 %v928, 0.0
    %v993 = vmax.f32 %v929, 0.0
    %v994 = vmax.f32 %v930, 0.0
    %v995 = vmax.f32 %v931, 0.0
    %v996 = vmax.f32 %v932, 0.0
    %v997 = vmax.f32 %v933, 0.0
    %v998 = vmax.f32 %v934, 0.0
    %v999 = vmax.f32 %v935, 0.0
    %v1000 = vmax.f32 %v936, 0.0
    %v1001 = vmax.f32 %v937, 0.0
    %v1002 = vmax.f32 %v938, 0.0
    %v1003 = vmax.f32 %v939, 0.0
    %v1004 = vmax.f32 %v940, 0.0
    %v1005 = vmax.f32 %v941, 0.0
    %v1006 = vmax.f32 %v942, 0.0
    %v1007 = vmax.f32 %v943, 0.0
    %v1008 = vmax.f32 %v944, 0.0
    %v1009 = vmax.f32 %v945, 0.0
    %v1010 = vmax.f32 %v946, 0.0
    %v1011 = vmax.f32 %v947, 0.0
    %v1012 = vmax.f32 %v948, 0.0
    %v1013 = vmax.f32 %v949, 0.0
    %v1014 = vmax.f32 %v950, 0.0
    %v1015 = vmax.f32 %v951, 0.0
    %v1016 = vmax.f32 %v952, 0.0
    %v1017 = vmax.f32 %v953, 0.0
    %v1018 = vmax.f32 %v954, 0.0
    %v1019 = vmax.f32 %v955, 0.0
    %v1020 = vmax.f32 %v956, 0.0
    %v1021 = vmax.f32 %v957, 0.0
    %v1022 = vmax.f32 %v958, 0.0
    %v1023 = vmax.f32 %v959, 0.0
    %v1024 = vmax.f32 %v960, 0.0
    %v1025 = vmax.f32 %v961, 0.0
    %v1026 = vmax.f32 %v962, 0.0
    %v1027 = vmax.f32 %v963, 0.0
    %v1028 = vmax.f32 %v964, 0.0
    %v1029 = vmax.f32 %v965, 0.0
    %v1030 = vmax.f32 %v966, 0.0
    %v1031 = vmax.f32 %v967, 0.0
    %v1032 = vmax.f32 %v968, 0.0
    %v1033 = vmax.f32 %v969, 0.0
    %v1034 = vmax.f32 %v970, 0.0
    %v1035 = vmax.f32 %v971, 0.0
    %v1036 = vmax.f32 %v972, 0.0
    %v1037 = vmax.f32 %v973, 0.0
    %v1038 = vmax.f32 %v974, 0.0
    %v1039 = vmax.f32 %v975, 0.0
    %v1040 = vmax.f32 %v976, 0.0
    %v1041 = vmax.f32 %v977, 0.0
    %v1042 = vmax.f32 %v978, 0.0
    %v1043 = vmax.f32 %v979, 0.0
    %v1044 = vmax.f32 %v980, 0.0
    %v1045 = vmax.f32 %v981, 0.0
    %v1046 = vmax.f32 %v982, 0.0
    %1047 = vst [vmem:[%s4] sm:$0xff] %v983
    %1048 = vst [vmem:[%s4 + $0x8] sm:$0xff] %v984
    %1049 = vst [vmem:[%s4 + $0x10] sm:$0xff] %v985
    %1050 = vst [vmem:[%s4 + $0x18] sm:$0xff] %v986
    %1051 = vst [vmem:[%s4 + $0x20] sm:$0xff] %v987
    %1052 = vst [vmem:[%s4 + $0x28] sm:$0xff] %v988
    %1053 = vst [vmem:[%s4 + $0x30] sm:$0xff] %v989
    %1054 = vst [vmem:[%s4 + $0x38] sm:$0xff] %v990
    %1055 = vst [vmem:[%s4 + $0x40] sm:$0xff] %v991
    %1056 = vst [vmem:[%s4 + $0x48] sm:$0xff] %v992
    %1057 = vst [vmem:[%s4 + $0x50] sm:$0xff] %v993
    %1058 = vst [vmem:[%s4 + $0x58] sm:$0xff] %v994
    %1059 = vst [vmem:[%s4 + $0x60] sm:$0xff] %v995
    %1060 = vst [vmem:[%s4 + $0x68] sm:$0xff] %v996
    %1061 = vst [vmem:[%s4 + $0x70] sm:$0xff] %v997
    %1062 = vst [vmem:[%s4 + $0x78] sm:$0xff] %v998
    %1063 = vst [vmem:[%s4 + $0x80] sm:$0xff] %v999
    %1064 = vst [vmem:[%s4 + $0x88] sm:$0xff] %v1000
    %1065 = vst [vmem:[%s4 + $0x90] sm:$0xff] %v1001
    %1066 = vst [vmem:[%s4 + $0x98] sm:$0xff] %v1002
    %1067 = vst [vmem:[%s4 + $0xa0] sm:$0xff] %v1003
    %1068 = vst [vmem:[%s4 + $0xa8] sm:$0xff] %v1004
    %1069 = vst [vmem:[%s4 + $0xb0] sm:$0xff] %v1005
    %1070 = vst [vmem:[%s4 + $0xb8] sm:$0xff] %v1006
    %1071 = vst [vmem:[%s4 + $0xc0] sm:$0xff] %v1007
    %1072 = vst [vmem:[%s4 + $0xc8] sm:$0xff] %v1008
    %1073 = vst [vmem:[%s4 + $0xd0] sm:$0xff] %v1009
    %1074 = vst [vmem:[%s4 + $0xd8] sm:$0xff] %v1010
    %1075 = vst [vmem:[%s4 + $0xe0] sm:$0xff] %v1011
    %1076 = vst [vmem:[%s4 + $0xe8] sm:$0xff] %v1012
    %1077 = vst [vmem:[%s4 + $0xf0] sm:$0xff] %v1013
    %1078 = vst [vmem:[%s4 + $0xf8] sm:$0xff] %v1014
    %1079 = vst [vmem:[%s4 + $0x100] sm:$0xff] %v1015
    %1080 = vst [vmem:[%s4 + $0x108] sm:$0xff] %v1016
    %1081 = vst [vmem:[%s4 + $0x110] sm:$0xff] %v1017
    %1082 = vst [vmem:[%s4 + $0x118] sm:$0xff] %v1018
    %1083 = vst [vmem:[%s4 + $0x120] sm:$0xff] %v1019
    %1084 = vst [vmem:[%s4 + $0x128] sm:$0xff] %v1020
    %1085 = vst [vmem:[%s4 + $0x130] sm:$0xff] %v1021
    %1086 = vst [vmem:[%s4 + $0x138] sm:$0xff] %v1022
    %1087 = vst [vmem:[%s4 + $0x140] sm:$0xff] %v1023
    %1088 = vst [vmem:[%s4 + $0x148] sm:$0xff] %v1024
    %1089 = vst [vmem:[%s4 + $0x150] sm:$0xff] %v1025
    %1090 = vst [vmem:[%s4 + $0x158] sm:$0xff] %v1026
    %1091 = vst [vmem:[%s4 + $0x160] sm:$0xff] %v1027
    %1092 = vst [vmem:[%s4 + $0x168] sm:$0xff] %v1028
    %1093 = vst [vmem:[%s4 + $0x170] sm:$0xff] %v1029
    %1094 = vst [vmem:[%s4 + $0x178] sm:$0xff] %v1030
    %1095 = vst [vmem:[%s4 + $0x180] sm:$0xff] %v1031
    %1096 = vst [vmem:[%s4 + $0x188] sm:$0xff] %v1032
    %1097 = vst [vmem:[%s4 + $0x190] sm:$0xff] %v1033
    %1098 = vst [vmem:[%s4 + $0x198] sm:$0xff] %v1034
    %1099 = vst [vmem:[%s4 + $0x1a0] sm:$0xff] %v1035
    %1100 = vst [vmem:[%s4 + $0x1a8] sm:$0xff] %v1036
    %1101 = vst [vmem:[%s4 + $0x1b0] sm:$0xff] %v1037
    %1102 = vst [vmem:[%s4 + $0x1b8] sm:$0xff] %v1038
    %1103 = vst [vmem:[%s4 + $0x1c0] sm:$0xff] %v1039
    %1104 = vst [vmem:[%s4 + $0x1c8] sm:$0xff] %v1040
    %1105 = vst [vmem:[%s4 + $0x1d0] sm:$0xff] %v1041
    %1106 = vst [vmem:[%s4 + $0x1d8] sm:$0xff] %v1042
    %1107 = vst [vmem:[%s4 + $0x1e0] sm:$0xff] %v1043
    %1108 = vst [vmem:[%s4 + $0x1e8] sm:$0xff] %v1044
    %1109 = vst [vmem:[%s4 + $0x1f0] sm:$0xff] %v1045
    %1110 = vst [vmem:[%s4 + $0x1f8] sm:$0xff] %v1046
  $region25: #{activated2d.1} parent=0 // pred_fallthru
    _
  // Predicated region
  $region26: #{activated2d.1} parent=0 // pred_check
    _
  $region27: #{activated2d.1} parent=0 // pred_check_branch
    %1112 = sbr.rel (0) target = $region29
  $region28: #{activated2d.1} parent=0 // pred_region
    _
  $region29: #{activated2d.1} parent=0 // pred_fallthru
    _
  // Predicated region
  $region30: #{activated2d.1} parent=0 // pred_check
    _
  $region31: #{activated2d.1} parent=0 // pred_check_branch
    %1114 = sbr.rel (0) target = $region33
  $region32: #{activated2d.1} parent=0 // pred_region
    _
  $region33: #{activated2d.1} parent=0 // pred_fallthru
    _

</llo_original>
